<compile_context>
chip_gen: v6e
topology: v6e:2x2x1
jax: 0.10.0
libtpu: 0.0.40
codegen_flags: <defaults>
</compile_context>

<pallas_src>
import jax
import jax.numpy as jnp
from jax import lax
from jax.experimental import pallas as pl
from jax.experimental.pallas import tpu as pltpu

K = 5
STRIDE = 3
PADDING = 3
GROUPS = 2

# taps contributing to output phase p along one axis: k = p + 3*m, k < K
M_TAPS = ((0, 1), (0, 1), (0,))


def convt_phase_kernel(x_ref, w_ref, o_ref, acc_ref):
    # x_ref  : (1, H, W, in_cg)         bf16  (one batch element, one group)
    # w_ref  : (1, K*K, in_cg, out_cg)  bf16  (per-group weight, tap-major ky*K+kx)
    # o_ref  : (9, TJ*I, out_cg)        f32   (phase-major output row-tile)
    # acc_ref: (TJ*I, out_cg)           f32   (VMEM accumulator)
    W = x_ref.shape[2]
    I = W - 1
    TJxI = acc_ref.shape[0]
    TJ = TJxI // I
    in_cg = x_ref.shape[3]

    t = pl.program_id(2)
    j0 = pl.multiple_of(t * TJ, TJ)

    w = w_ref[0]                                   # (K*K, in_cg, out_cg)
    # TJ+1 input rows cover both row shifts needed by this output row-tile.
    xr = x_ref[0, pl.ds(j0, TJ + 1), :, :]         # (TJ+1, W, in_cg)

    # The four shifted windows shared by all 9 phases (built once, not per tap).
    patches = {}
    for my in (0, 1):
        for mx in (0, 1):
            p = xr[1 - my:1 - my + TJ, 1 - mx:1 - mx + I, :]
            patches[(my, mx)] = p.reshape(TJ * I, in_cg)

    for py in range(3):
        for px in range(3):
            first = True
            for my in M_TAPS[py]:
                for mx in M_TAPS[px]:
                    tap = (py + 3 * my) * K + (px + 3 * mx)
                    contrib = jnp.dot(patches[(my, mx)], w[tap],
                                      preferred_element_type=jnp.float32)
                    if first:
                        acc_ref[...] = contrib
                        first = False
                    else:
                        acc_ref[...] += contrib
            a = acc_ref[...]
            # where(a > 0, a, -0.5*a) followed by relu  ==  max(a, -0.5*a)
            o_ref[py * 3 + px] = jnp.maximum(a, a * (-0.5)).astype(o_ref.dtype)


def model_forward(x_nchw, wt, tj=None):
    """x_nchw: (N, Cin, H, W) f32.  wt: ConvTranspose2d weight (Cin, Cout//G, K, K)."""
    N, Cin, H, Wd = x_nchw.shape
    out_cg = wt.shape[1]
    in_cg = Cin // GROUPS
    Cout = out_cg * GROUPS

    Hout = (H - 1) * STRIDE - 2 * PADDING + K          # 3H - 4
    Wout = (Wd - 1) * STRIDE - 2 * PADDING + K         # 3W - 4
    J, I = H - 1, Wd - 1                               # per-phase extents (padded by 1)

    if tj is None:
        tj = J
    assert J % tj == 0, (J, tj)
    n_jt = J // tj

    # ---- glue: per-group NHWC input slabs, bf16 for the MXU
    xg = x_nchw.reshape(N, GROUPS, in_cg, H, Wd)
    xg = jnp.transpose(xg, (0, 1, 3, 4, 2))                         # (N,G,H,W,in_cg)
    xg = xg.reshape(N * GROUPS, H, Wd, in_cg).astype(jnp.bfloat16)

    # ---- glue: per-group weight, tap-major; no flip, no block-diagonal zeros
    wg = wt.reshape(GROUPS, in_cg, out_cg, K, K)
    wg = jnp.transpose(wg, (0, 3, 4, 1, 2))                         # (G,K,K,in_cg,out_cg)
    wg = wg.reshape(GROUPS, K * K, in_cg, out_cg).astype(jnp.bfloat16)

    out_phase = pl.pallas_call(
        convt_phase_kernel,
        out_shape=jax.ShapeDtypeStruct((N * GROUPS * 9, J * I, out_cg), jnp.float32),
        grid_spec=pltpu.PrefetchScalarGridSpec(
            num_scalar_prefetch=0,
            grid=(N, GROUPS, n_jt),
            in_specs=[
                pl.BlockSpec((1, H, Wd, in_cg),
                             lambda n, g, t: (n * GROUPS + g, 0, 0, 0)),
                pl.BlockSpec((1, K * K, in_cg, out_cg),
                             lambda n, g, t: (g, 0, 0, 0)),
            ],
            out_specs=pl.BlockSpec((9, tj * I, out_cg),
                                   lambda n, g, t: (n * GROUPS + g, t, 0)),
            scratch_shapes=[pltpu.VMEM((tj * I, out_cg), jnp.float32)],
        ),
        compiler_params=pltpu.CompilerParams(
            dimension_semantics=("parallel", "parallel", "parallel"),
            vmem_limit_bytes=64 * 1024 * 1024,
        ),
    )(xg, wg)

    # ---- glue: interleave the 3x3 phases back to (N, Hout, Wout, Cout), then NCHW
    y = out_phase.reshape(N, GROUPS, 3, 3, J, I, out_cg)
    y = jnp.transpose(y, (0, 4, 2, 5, 3, 1, 6))        # (N, J, py, I, px, G, oc)
    y = y.reshape(N, 3 * J, 3 * I, Cout)[:, :Hout, :Wout, :]
    return jnp.transpose(y, (0, 3, 1, 2))              # NCHW


def reference(x_nchw, wt):
    """XLA reference (same bf16 matmul inputs / f32 accumulation as the kernel)."""
    Cin = x_nchw.shape[1]
    out_cg = wt.shape[1]
    in_cg = Cin // GROUPS
    # equivalent OIHW conv weight (flipped, in/out swapped per group)
    w_oihw = jnp.stack([
        jnp.transpose(wt[g * in_cg:(g + 1) * in_cg, :, ::-1, ::-1], (1, 0, 2, 3))
        for g in range(GROUPS)
    ], axis=0).reshape(GROUPS * out_cg, in_cg, K, K)
    y = lax.conv_general_dilated(
        x_nchw.astype(jnp.bfloat16), w_oihw.astype(jnp.bfloat16),
        window_strides=(1, 1),
        padding=((K - 1 - PADDING,) * 2, (K - 1 - PADDING,) * 2),
        lhs_dilation=(STRIDE, STRIDE),
        dimension_numbers=("NCHW", "OIHW", "NCHW"),
        feature_group_count=GROUPS,
        preferred_element_type=jnp.float32)
    z = jnp.where(y > 0, y, y * (-0.5))
    return jnp.maximum(z, 0.0)


if __name__ == "__main__":
    # Small shapes consistent with the module (472->470, groups=2, k=5, s=3, p=3);
    # here Cin=8, Cout=8, groups=2, H=W=9 so the row-tiling path (2 tiles) is exercised.
    N, Cin, H, W = 2, 8, 9, 9
    Cout = 8
    out_cg = Cout // GROUPS

    key = jax.random.PRNGKey(0)
    kx, kw = jax.random.split(key)
    x0 = jax.random.normal(kx, (N, Cin, H, W), jnp.float32)
    # ConvTranspose2d weight shape: (in_channels, out_channels // groups, kH, kW)
    wt = jax.random.normal(kw, (Cin, out_cg, K, K), jnp.float32) * 0.1

    out = model_forward(x0, wt, tj=4)
    jax.block_until_ready(out)

    ref = reference(x0, wt)
    assert out.shape == ref.shape, (out.shape, ref.shape)
    assert jnp.allclose(out, ref, atol=2e-2, rtol=2e-2), \
        float(jnp.max(jnp.abs(out - ref)))

    print("KERNEL_OK")
</pallas_src>

<mosaic_0001>
module attributes {stable_mosaic.version = 11 : i64} {
  func.func @convt_phase_kernel(%arg0: i32, %arg1: i32, %arg2: i32, %arg3: memref<1x9x9x4xbf16, #tpu.memory_space<vmem>>, %arg4: memref<1x25x4x4xbf16, #tpu.memory_space<vmem>>, %arg5: memref<9x32x4xf32, #tpu.memory_space<vmem>>, %arg6: memref<32x4xf32, #tpu.memory_space<vmem>>) attributes {dimension_semantics = [#tpu.dimension_semantics<parallel>, #tpu.dimension_semantics<parallel>, #tpu.dimension_semantics<parallel>], iteration_bounds = array<i64: 2, 2, 2>, scalar_prefetch = 0 : i64, scratch_operands = 1 : i64, tpu.core_type = #tpu.core_type<tc>, window_params = [{transform_indices = @transform_0, window_bounds = array<i64: 1, 9, 9, 4>}, {transform_indices = @transform_1, window_bounds = array<i64: 1, 25, 4, 4>}, {transform_indices = @transform_2, window_bounds = array<i64: 9, 32, 4>}]} {
    %c4_i32 = arith.constant 4 : i32
    %0 = arith.muli %arg2, %c4_i32 : i32
    %1 = tpu.assume_multiple %0, 4 : i32
    %c0 = arith.constant 0 : index
    %c0_0 = arith.constant 0 : index
    %c0_1 = arith.constant 0 : index
    %c0_2 = arith.constant 0 : index
    %2 = vector.load %arg4[%c0, %c0_0, %c0_1, %c0_2] : memref<1x25x4x4xbf16, #tpu.memory_space<vmem>>, vector<1x25x4x4xbf16>
    %3 = vector.shape_cast %2 : vector<1x25x4x4xbf16> to vector<25x4x4xbf16>
    %c0_3 = arith.constant 0 : index
    %4 = arith.index_cast %1 : i32 to index
    %c0_4 = arith.constant 0 : index
    %c0_5 = arith.constant 0 : index
    %5 = vector.load %arg3[%c0_3, %4, %c0_4, %c0_5] : memref<1x9x9x4xbf16, #tpu.memory_space<vmem>>, vector<1x5x9x4xbf16>
    %6 = vector.shape_cast %5 : vector<1x5x9x4xbf16> to vector<5x9x4xbf16>
    %7 = vector.extract_strided_slice %6 {offsets = [1, 1, 0], sizes = [4, 8, 4], strides = [1, 1, 1]} : vector<5x9x4xbf16> to vector<4x8x4xbf16>
    %8 = vector.shape_cast %7 : vector<4x8x4xbf16> to vector<32x4xbf16>
    %9 = vector.extract_strided_slice %6 {offsets = [1, 0, 0], sizes = [4, 8, 4], strides = [1, 1, 1]} : vector<5x9x4xbf16> to vector<4x8x4xbf16>
    %10 = vector.shape_cast %9 : vector<4x8x4xbf16> to vector<32x4xbf16>
    %11 = vector.extract_strided_slice %6 {offsets = [0, 1, 0], sizes = [4, 8, 4], strides = [1, 1, 1]} : vector<5x9x4xbf16> to vector<4x8x4xbf16>
    %12 = vector.shape_cast %11 : vector<4x8x4xbf16> to vector<32x4xbf16>
    %13 = vector.extract_strided_slice %6 {offsets = [0, 0, 0], sizes = [4, 8, 4], strides = [1, 1, 1]} : vector<5x9x4xbf16> to vector<4x8x4xbf16>
    %14 = vector.shape_cast %13 : vector<4x8x4xbf16> to vector<32x4xbf16>
    %15 = vector.extract_strided_slice %3 {offsets = [0, 0, 0], sizes = [1, 4, 4], strides = [1, 1, 1]} : vector<25x4x4xbf16> to vector<1x4x4xbf16>
    %16 = vector.shape_cast %15 : vector<1x4x4xbf16> to vector<4x4xbf16>
    %cst = arith.constant dense<0.000000e+00> : vector<32x4xf32>
    %17 = tpu.matmul %8, %16, %cst {dimension_numbers = #tpu.dot_dimension_numbers<[1], [0], [0], [1], [0, 0, 1, 1], [], []>} : vector<32x4xbf16>, vector<4x4xbf16>, vector<32x4xf32> -> vector<32x4xf32>
    %c0_6 = arith.constant 0 : index
    %c0_7 = arith.constant 0 : index
    %18 = vector.load %arg6[%c0_6, %c0_7] : memref<32x4xf32, #tpu.memory_space<vmem>>, vector<32x4xf32>
    tpu.vector_store %arg6[%c0_6, %c0_7], %17 {strides = array<i32>} : memref<32x4xf32, #tpu.memory_space<vmem>>, vector<32x4xf32>,
    %19 = vector.extract_strided_slice %3 {offsets = [3, 0, 0], sizes = [1, 4, 4], strides = [1, 1, 1]} : vector<25x4x4xbf16> to vector<1x4x4xbf16>
    %20 = vector.shape_cast %19 : vector<1x4x4xbf16> to vector<4x4xbf16>
    %cst_8 = arith.constant dense<0.000000e+00> : vector<32x4xf32>
    %21 = tpu.matmul %10, %20, %cst_8 {dimension_numbers = #tpu.dot_dimension_numbers<[1], [0], [0], [1], [0, 0, 1, 1], [], []>} : vector<32x4xbf16>, vector<4x4xbf16>, vector<32x4xf32> -> vector<32x4xf32>
    %c0_9 = arith.constant 0 : index
    %c0_10 = arith.constant 0 : index
    %22 = vector.load %arg6[%c0_9, %c0_10] : memref<32x4xf32, #tpu.memory_space<vmem>>, vector<32x4xf32>
    %23 = arith.addf %22, %21 : vector<32x4xf32>
    %c0_11 = arith.constant 0 : index
    %c0_12 = arith.constant 0 : index
    %24 = vector.load %arg6[%c0_11, %c0_12] : memref<32x4xf32, #tpu.memory_space<vmem>>, vector<32x4xf32>
    tpu.vector_store %arg6[%c0_11, %c0_12], %23 {strides = array<i32>} : memref<32x4xf32, #tpu.memory_space<vmem>>, vector<32x4xf32>,
    %25 = vector.extract_strided_slice %3 {offsets = [15, 0, 0], sizes = [1, 4, 4], strides = [1, 1, 1]} : vector<25x4x4xbf16> to vector<1x4x4xbf16>
    %26 = vector.shape_cast %25 : vector<1x4x4xbf16> to vector<4x4xbf16>
    %cst_13 = arith.constant dense<0.000000e+00> : vector<32x4xf32>
    %27 = tpu.matmul %12, %26, %cst_13 {dimension_numbers = #tpu.dot_dimension_numbers<[1], [0], [0], [1], [0, 0, 1, 1], [], []>} : vector<32x4xbf16>, vector<4x4xbf16>, vector<32x4xf32> -> vector<32x4xf32>
    %c0_14 = arith.constant 0 : index
    %c0_15 = arith.constant 0 : index
    %28 = vector.load %arg6[%c0_14, %c0_15] : memref<32x4xf32, #tpu.memory_space<vmem>>, vector<32x4xf32>
    %29 = arith.addf %28, %27 : vector<32x4xf32>
    %c0_16 = arith.constant 0 : index
    %c0_17 = arith.constant 0 : index
    %30 = vector.load %arg6[%c0_16, %c0_17] : memref<32x4xf32, #tpu.memory_space<vmem>>, vector<32x4xf32>
    tpu.vector_store %arg6[%c0_16, %c0_17], %29 {strides = array<i32>} : memref<32x4xf32, #tpu.memory_space<vmem>>, vector<32x4xf32>,
    %31 = vector.extract_strided_slice %3 {offsets = [18, 0, 0], sizes = [1, 4, 4], strides = [1, 1, 1]} : vector<25x4x4xbf16> to vector<1x4x4xbf16>
    %32 = vector.shape_cast %31 : vector<1x4x4xbf16> to vector<4x4xbf16>
    %cst_18 = arith.constant dense<0.000000e+00> : vector<32x4xf32>
    %33 = tpu.matmul %14, %32, %cst_18 {dimension_numbers = #tpu.dot_dimension_numbers<[1], [0], [0], [1], [0, 0, 1, 1], [], []>} : vector<32x4xbf16>, vector<4x4xbf16>, vector<32x4xf32> -> vector<32x4xf32>
    %c0_19 = arith.constant 0 : index
    %c0_20 = arith.constant 0 : index
    %34 = vector.load %arg6[%c0_19, %c0_20] : memref<32x4xf32, #tpu.memory_space<vmem>>, vector<32x4xf32>
    %35 = arith.addf %34, %33 : vector<32x4xf32>
    %c0_21 = arith.constant 0 : index
    %c0_22 = arith.constant 0 : index
    %36 = vector.load %arg6[%c0_21, %c0_22] : memref<32x4xf32, #tpu.memory_space<vmem>>, vector<32x4xf32>
    tpu.vector_store %arg6[%c0_21, %c0_22], %35 {strides = array<i32>} : memref<32x4xf32, #tpu.memory_space<vmem>>, vector<32x4xf32>,
    %c0_23 = arith.constant 0 : index
    %c0_24 = arith.constant 0 : index
    %37 = vector.load %arg6[%c0_23, %c0_24] : memref<32x4xf32, #tpu.memory_space<vmem>>, vector<32x4xf32>
    %cst_25 = arith.constant -5.000000e-01 : f32
    %38 = vector.broadcast %cst_25 : f32 to vector<32x4xf32>
    %39 = arith.mulf %37, %38 : vector<32x4xf32>
    %40 = arith.maximumf %37, %39 : vector<32x4xf32>
    %c0_26 = arith.constant 0 : index
    %c0_27 = arith.constant 0 : index
    %c0_28 = arith.constant 0 : index
    %41 = vector.load %arg5[%c0_26, %c0_27, %c0_28] : memref<9x32x4xf32, #tpu.memory_space<vmem>>, vector<1x32x4xf32>
    %42 = vector.shape_cast %41 : vector<1x32x4xf32> to vector<32x4xf32>
    %43 = vector.shape_cast %40 : vector<32x4xf32> to vector<1x32x4xf32>
    tpu.vector_store %arg5[%c0_26, %c0_27, %c0_28], %43 {strides = array<i32>} : memref<9x32x4xf32, #tpu.memory_space<vmem>>, vector<1x32x4xf32>,
    %44 = vector.extract_strided_slice %3 {offsets = [1, 0, 0], sizes = [1, 4, 4], strides = [1, 1, 1]} : vector<25x4x4xbf16> to vector<1x4x4xbf16>
    %45 = vector.shape_cast %44 : vector<1x4x4xbf16> to vector<4x4xbf16>
    %cst_29 = arith.constant dense<0.000000e+00> : vector<32x4xf32>
    %46 = tpu.matmul %8, %45, %cst_29 {dimension_numbers = #tpu.dot_dimension_numbers<[1], [0], [0], [1], [0, 0, 1, 1], [], []>} : vector<32x4xbf16>, vector<4x4xbf16>, vector<32x4xf32> -> vector<32x4xf32>
    %c0_30 = arith.constant 0 : index
    %c0_31 = arith.constant 0 : index
    %47 = vector.load %arg6[%c0_30, %c0_31] : memref<32x4xf32, #tpu.memory_space<vmem>>, vector<32x4xf32>
    tpu.vector_store %arg6[%c0_30, %c0_31], %46 {strides = array<i32>} : memref<32x4xf32, #tpu.memory_space<vmem>>, vector<32x4xf32>,
    %48 = vector.extract_strided_slice %3 {offsets = [4, 0, 0], sizes = [1, 4, 4], strides = [1, 1, 1]} : vector<25x4x4xbf16> to vector<1x4x4xbf16>
    %49 = vector.shape_cast %48 : vector<1x4x4xbf16> to vector<4x4xbf16>
    %cst_32 = arith.constant dense<0.000000e+00> : vector<32x4xf32>
    %50 = tpu.matmul %10, %49, %cst_32 {dimension_numbers = #tpu.dot_dimension_numbers<[1], [0], [0], [1], [0, 0, 1, 1], [], []>} : vector<32x4xbf16>, vector<4x4xbf16>, vector<32x4xf32> -> vector<32x4xf32>
    %c0_33 = arith.constant 0 : index
    %c0_34 = arith.constant 0 : index
    %51 = vector.load %arg6[%c0_33, %c0_34] : memref<32x4xf32, #tpu.memory_space<vmem>>, vector<32x4xf32>
    %52 = arith.addf %51, %50 : vector<32x4xf32>
    %c0_35 = arith.constant 0 : index
    %c0_36 = arith.constant 0 : index
    %53 = vector.load %arg6[%c0_35, %c0_36] : memref<32x4xf32, #tpu.memory_space<vmem>>, vector<32x4xf32>
    tpu.vector_store %arg6[%c0_35, %c0_36], %52 {strides = array<i32>} : memref<32x4xf32, #tpu.memory_space<vmem>>, vector<32x4xf32>,
    %54 = vector.extract_strided_slice %3 {offsets = [16, 0, 0], sizes = [1, 4, 4], strides = [1, 1, 1]} : vector<25x4x4xbf16> to vector<1x4x4xbf16>
    %55 = vector.shape_cast %54 : vector<1x4x4xbf16> to vector<4x4xbf16>
    %cst_37 = arith.constant dense<0.000000e+00> : vector<32x4xf32>
    %56 = tpu.matmul %12, %55, %cst_37 {dimension_numbers = #tpu.dot_dimension_numbers<[1], [0], [0], [1], [0, 0, 1, 1], [], []>} : vector<32x4xbf16>, vector<4x4xbf16>, vector<32x4xf32> -> vector<32x4xf32>
    %c0_38 = arith.constant 0 : index
    %c0_39 = arith.constant 0 : index
    %57 = vector.load %arg6[%c0_38, %c0_39] : memref<32x4xf32, #tpu.memory_space<vmem>>, vector<32x4xf32>
    %58 = arith.addf %57, %56 : vector<32x4xf32>
    %c0_40 = arith.constant 0 : index
    %c0_41 = arith.constant 0 : index
    %59 = vector.load %arg6[%c0_40, %c0_41] : memref<32x4xf32, #tpu.memory_space<vmem>>, vector<32x4xf32>
    tpu.vector_store %arg6[%c0_40, %c0_41], %58 {strides = array<i32>} : memref<32x4xf32, #tpu.memory_space<vmem>>, vector<32x4xf32>,
    %60 = vector.extract_strided_slice %3 {offsets = [19, 0, 0], sizes = [1, 4, 4], strides = [1, 1, 1]} : vector<25x4x4xbf16> to vector<1x4x4xbf16>
    %61 = vector.shape_cast %60 : vector<1x4x4xbf16> to vector<4x4xbf16>
    %cst_42 = arith.constant dense<0.000000e+00> : vector<32x4xf32>
    %62 = tpu.matmul %14, %61, %cst_42 {dimension_numbers = #tpu.dot_dimension_numbers<[1], [0], [0], [1], [0, 0, 1, 1], [], []>} : vector<32x4xbf16>, vector<4x4xbf16>, vector<32x4xf32> -> vector<32x4xf32>
    %c0_43 = arith.constant 0 : index
    %c0_44 = arith.constant 0 : index
    %63 = vector.load %arg6[%c0_43, %c0_44] : memref<32x4xf32, #tpu.memory_space<vmem>>, vector<32x4xf32>
    %64 = arith.addf %63, %62 : vector<32x4xf32>
    %c0_45 = arith.constant 0 : index
    %c0_46 = arith.constant 0 : index
    %65 = vector.load %arg6[%c0_45, %c0_46] : memref<32x4xf32, #tpu.memory_space<vmem>>, vector<32x4xf32>
    tpu.vector_store %arg6[%c0_45, %c0_46], %64 {strides = array<i32>} : memref<32x4xf32, #tpu.memory_space<vmem>>, vector<32x4xf32>,
    %c0_47 = arith.constant 0 : index
    %c0_48 = arith.constant 0 : index
    %66 = vector.load %arg6[%c0_47, %c0_48] : memref<32x4xf32, #tpu.memory_space<vmem>>, vector<32x4xf32>
    %cst_49 = arith.constant -5.000000e-01 : f32
    %67 = vector.broadcast %cst_49 : f32 to vector<32x4xf32>
    %68 = arith.mulf %66, %67 : vector<32x4xf32>
    %69 = arith.maximumf %66, %68 : vector<32x4xf32>
    %c1 = arith.constant 1 : index
    %c0_50 = arith.constant 0 : index
    %c0_51 = arith.constant 0 : index
    %70 = vector.load %arg5[%c1, %c0_50, %c0_51] : memref<9x32x4xf32, #tpu.memory_space<vmem>>, vector<1x32x4xf32>
    %71 = vector.shape_cast %70 : vector<1x32x4xf32> to vector<32x4xf32>
    %72 = vector.shape_cast %69 : vector<32x4xf32> to vector<1x32x4xf32>
    tpu.vector_store %arg5[%c1, %c0_50, %c0_51], %72 {strides = array<i32>} : memref<9x32x4xf32, #tpu.memory_space<vmem>>, vector<1x32x4xf32>,
    %73 = vector.extract_strided_slice %3 {offsets = [2, 0, 0], sizes = [1, 4, 4], strides = [1, 1, 1]} : vector<25x4x4xbf16> to vector<1x4x4xbf16>
    %74 = vector.shape_cast %73 : vector<1x4x4xbf16> to vector<4x4xbf16>
    %cst_52 = arith.constant dense<0.000000e+00> : vector<32x4xf32>
    %75 = tpu.matmul %8, %74, %cst_52 {dimension_numbers = #tpu.dot_dimension_numbers<[1], [0], [0], [1], [0, 0, 1, 1], [], []>} : vector<32x4xbf16>, vector<4x4xbf16>, vector<32x4xf32> -> vector<32x4xf32>
    %c0_53 = arith.constant 0 : index
    %c0_54 = arith.constant 0 : index
    %76 = vector.load %arg6[%c0_53, %c0_54] : memref<32x4xf32, #tpu.memory_space<vmem>>, vector<32x4xf32>
    tpu.vector_store %arg6[%c0_53, %c0_54], %75 {strides = array<i32>} : memref<32x4xf32, #tpu.memory_space<vmem>>, vector<32x4xf32>,
    %77 = vector.extract_strided_slice %3 {offsets = [17, 0, 0], sizes = [1, 4, 4], strides = [1, 1, 1]} : vector<25x4x4xbf16> to vector<1x4x4xbf16>
    %78 = vector.shape_cast %77 : vector<1x4x4xbf16> to vector<4x4xbf16>
    %cst_55 = arith.constant dense<0.000000e+00> : vector<32x4xf32>
    %79 = tpu.matmul %12, %78, %cst_55 {dimension_numbers = #tpu.dot_dimension_numbers<[1], [0], [0], [1], [0, 0, 1, 1], [], []>} : vector<32x4xbf16>, vector<4x4xbf16>, vector<32x4xf32> -> vector<32x4xf32>
    %c0_56 = arith.constant 0 : index
    %c0_57 = arith.constant 0 : index
    %80 = vector.load %arg6[%c0_56, %c0_57] : memref<32x4xf32, #tpu.memory_space<vmem>>, vector<32x4xf32>
    %81 = arith.addf %80, %79 : vector<32x4xf32>
    %c0_58 = arith.constant 0 : index
    %c0_59 = arith.constant 0 : index
    %82 = vector.load %arg6[%c0_58, %c0_59] : memref<32x4xf32, #tpu.memory_space<vmem>>, vector<32x4xf32>
    tpu.vector_store %arg6[%c0_58, %c0_59], %81 {strides = array<i32>} : memref<32x4xf32, #tpu.memory_space<vmem>>, vector<32x4xf32>,
    %c0_60 = arith.constant 0 : index
    %c0_61 = arith.constant 0 : index
    %83 = vector.load %arg6[%c0_60, %c0_61] : memref<32x4xf32, #tpu.memory_space<vmem>>, vector<32x4xf32>
    %cst_62 = arith.constant -5.000000e-01 : f32
    %84 = vector.broadcast %cst_62 : f32 to vector<32x4xf32>
    %85 = arith.mulf %83, %84 : vector<32x4xf32>
    %86 = arith.maximumf %83, %85 : vector<32x4xf32>
    %c2 = arith.constant 2 : index
    %c0_63 = arith.constant 0 : index
    %c0_64 = arith.constant 0 : index
    %87 = vector.load %arg5[%c2, %c0_63, %c0_64] : memref<9x32x4xf32, #tpu.memory_space<vmem>>, vector<1x32x4xf32>
    %88 = vector.shape_cast %87 : vector<1x32x4xf32> to vector<32x4xf32>
    %89 = vector.shape_cast %86 : vector<32x4xf32> to vector<1x32x4xf32>
    tpu.vector_store %arg5[%c2, %c0_63, %c0_64], %89 {strides = array<i32>} : memref<9x32x4xf32, #tpu.memory_space<vmem>>, vector<1x32x4xf32>,
    %90 = vector.extract_strided_slice %3 {offsets = [5, 0, 0], sizes = [1, 4, 4], strides = [1, 1, 1]} : vector<25x4x4xbf16> to vector<1x4x4xbf16>
    %91 = vector.shape_cast %90 : vector<1x4x4xbf16> to vector<4x4xbf16>
    %cst_65 = arith.constant dense<0.000000e+00> : vector<32x4xf32>
    %92 = tpu.matmul %8, %91, %cst_65 {dimension_numbers = #tpu.dot_dimension_numbers<[1], [0], [0], [1], [0, 0, 1, 1], [], []>} : vector<32x4xbf16>, vector<4x4xbf16>, vector<32x4xf32> -> vector<32x4xf32>
    %c0_66 = arith.constant 0 : index
    %c0_67 = arith.constant 0 : index
    %93 = vector.load %arg6[%c0_66, %c0_67] : memref<32x4xf32, #tpu.memory_space<vmem>>, vector<32x4xf32>
    tpu.vector_store %arg6[%c0_66, %c0_67], %92 {strides = array<i32>} : memref<32x4xf32, #tpu.memory_space<vmem>>, vector<32x4xf32>,
    %94 = vector.extract_strided_slice %3 {offsets = [8, 0, 0], sizes = [1, 4, 4], strides = [1, 1, 1]} : vector<25x4x4xbf16> to vector<1x4x4xbf16>
    %95 = vector.shape_cast %94 : vector<1x4x4xbf16> to vector<4x4xbf16>
    %cst_68 = arith.constant dense<0.000000e+00> : vector<32x4xf32>
    %96 = tpu.matmul %10, %95, %cst_68 {dimension_numbers = #tpu.dot_dimension_numbers<[1], [0], [0], [1], [0, 0, 1, 1], [], []>} : vector<32x4xbf16>, vector<4x4xbf16>, vector<32x4xf32> -> vector<32x4xf32>
    %c0_69 = arith.constant 0 : index
    %c0_70 = arith.constant 0 : index
    %97 = vector.load %arg6[%c0_69, %c0_70] : memref<32x4xf32, #tpu.memory_space<vmem>>, vector<32x4xf32>
    %98 = arith.addf %97, %96 : vector<32x4xf32>
    %c0_71 = arith.constant 0 : index
    %c0_72 = arith.constant 0 : index
    %99 = vector.load %arg6[%c0_71, %c0_72] : memref<32x4xf32, #tpu.memory_space<vmem>>, vector<32x4xf32>
    tpu.vector_store %arg6[%c0_71, %c0_72], %98 {strides = array<i32>} : memref<32x4xf32, #tpu.memory_space<vmem>>, vector<32x4xf32>,
    %100 = vector.extract_strided_slice %3 {offsets = [20, 0, 0], sizes = [1, 4, 4], strides = [1, 1, 1]} : vector<25x4x4xbf16> to vector<1x4x4xbf16>
    %101 = vector.shape_cast %100 : vector<1x4x4xbf16> to vector<4x4xbf16>
    %cst_73 = arith.constant dense<0.000000e+00> : vector<32x4xf32>
    %102 = tpu.matmul %12, %101, %cst_73 {dimension_numbers = #tpu.dot_dimension_numbers<[1], [0], [0], [1], [0, 0, 1, 1], [], []>} : vector<32x4xbf16>, vector<4x4xbf16>, vector<32x4xf32> -> vector<32x4xf32>
    %c0_74 = arith.constant 0 : index
    %c0_75 = arith.constant 0 : index
    %103 = vector.load %arg6[%c0_74, %c0_75] : memref<32x4xf32, #tpu.memory_space<vmem>>, vector<32x4xf32>
    %104 = arith.addf %103, %102 : vector<32x4xf32>
    %c0_76 = arith.constant 0 : index
    %c0_77 = arith.constant 0 : index
    %105 = vector.load %arg6[%c0_76, %c0_77] : memref<32x4xf32, #tpu.memory_space<vmem>>, vector<32x4xf32>
    tpu.vector_store %arg6[%c0_76, %c0_77], %104 {strides = array<i32>} : memref<32x4xf32, #tpu.memory_space<vmem>>, vector<32x4xf32>,
    %106 = vector.extract_strided_slice %3 {offsets = [23, 0, 0], sizes = [1, 4, 4], strides = [1, 1, 1]} : vector<25x4x4xbf16> to vector<1x4x4xbf16>
    %107 = vector.shape_cast %106 : vector<1x4x4xbf16> to vector<4x4xbf16>
    %cst_78 = arith.constant dense<0.000000e+00> : vector<32x4xf32>
    %108 = tpu.matmul %14, %107, %cst_78 {dimension_numbers = #tpu.dot_dimension_numbers<[1], [0], [0], [1], [0, 0, 1, 1], [], []>} : vector<32x4xbf16>, vector<4x4xbf16>, vector<32x4xf32> -> vector<32x4xf32>
    %c0_79 = arith.constant 0 : index
    %c0_80 = arith.constant 0 : index
    %109 = vector.load %arg6[%c0_79, %c0_80] : memref<32x4xf32, #tpu.memory_space<vmem>>, vector<32x4xf32>
    %110 = arith.addf %109, %108 : vector<32x4xf32>
    %c0_81 = arith.constant 0 : index
    %c0_82 = arith.constant 0 : index
    %111 = vector.load %arg6[%c0_81, %c0_82] : memref<32x4xf32, #tpu.memory_space<vmem>>, vector<32x4xf32>
    tpu.vector_store %arg6[%c0_81, %c0_82], %110 {strides = array<i32>} : memref<32x4xf32, #tpu.memory_space<vmem>>, vector<32x4xf32>,
    %c0_83 = arith.constant 0 : index
    %c0_84 = arith.constant 0 : index
    %112 = vector.load %arg6[%c0_83, %c0_84] : memref<32x4xf32, #tpu.memory_space<vmem>>, vector<32x4xf32>
    %cst_85 = arith.constant -5.000000e-01 : f32
    %113 = vector.broadcast %cst_85 : f32 to vector<32x4xf32>
    %114 = arith.mulf %112, %113 : vector<32x4xf32>
    %115 = arith.maximumf %112, %114 : vector<32x4xf32>
    %c3 = arith.constant 3 : index
    %c0_86 = arith.constant 0 : index
    %c0_87 = arith.constant 0 : index
    %116 = vector.load %arg5[%c3, %c0_86, %c0_87] : memref<9x32x4xf32, #tpu.memory_space<vmem>>, vector<1x32x4xf32>
    %117 = vector.shape_cast %116 : vector<1x32x4xf32> to vector<32x4xf32>
    %118 = vector.shape_cast %115 : vector<32x4xf32> to vector<1x32x4xf32>
    tpu.vector_store %arg5[%c3, %c0_86, %c0_87], %118 {strides = array<i32>} : memref<9x32x4xf32, #tpu.memory_space<vmem>>, vector<1x32x4xf32>,
    %119 = vector.extract_strided_slice %3 {offsets = [6, 0, 0], sizes = [1, 4, 4], strides = [1, 1, 1]} : vector<25x4x4xbf16> to vector<1x4x4xbf16>
    %120 = vector.shape_cast %119 : vector<1x4x4xbf16> to vector<4x4xbf16>
    %cst_88 = arith.constant dense<0.000000e+00> : vector<32x4xf32>
    %121 = tpu.matmul %8, %120, %cst_88 {dimension_numbers = #tpu.dot_dimension_numbers<[1], [0], [0], [1], [0, 0, 1, 1], [], []>} : vector<32x4xbf16>, vector<4x4xbf16>, vector<32x4xf32> -> vector<32x4xf32>
    %c0_89 = arith.constant 0 : index
    %c0_90 = arith.constant 0 : index
    %122 = vector.load %arg6[%c0_89, %c0_90] : memref<32x4xf32, #tpu.memory_space<vmem>>, vector<32x4xf32>
    tpu.vector_store %arg6[%c0_89, %c0_90], %121 {strides = array<i32>} : memref<32x4xf32, #tpu.memory_space<vmem>>, vector<32x4xf32>,
    %123 = vector.extract_strided_slice %3 {offsets = [9, 0, 0], sizes = [1, 4, 4], strides = [1, 1, 1]} : vector<25x4x4xbf16> to vector<1x4x4xbf16>
    %124 = vector.shape_cast %123 : vector<1x4x4xbf16> to vector<4x4xbf16>
    %cst_91 = arith.constant dense<0.000000e+00> : vector<32x4xf32>
    %125 = tpu.matmul %10, %124, %cst_91 {dimension_numbers = #tpu.dot_dimension_numbers<[1], [0], [0], [1], [0, 0, 1, 1], [], []>} : vector<32x4xbf16>, vector<4x4xbf16>, vector<32x4xf32> -> vector<32x4xf32>
    %c0_92 = arith.constant 0 : index
    %c0_93 = arith.constant 0 : index
    %126 = vector.load %arg6[%c0_92, %c0_93] : memref<32x4xf32, #tpu.memory_space<vmem>>, vector<32x4xf32>
    %127 = arith.addf %126, %125 : vector<32x4xf32>
    %c0_94 = arith.constant 0 : index
    %c0_95 = arith.constant 0 : index
    %128 = vector.load %arg6[%c0_94, %c0_95] : memref<32x4xf32, #tpu.memory_space<vmem>>, vector<32x4xf32>
    tpu.vector_store %arg6[%c0_94, %c0_95], %127 {strides = array<i32>} : memref<32x4xf32, #tpu.memory_space<vmem>>, vector<32x4xf32>,
    %129 = vector.extract_strided_slice %3 {offsets = [21, 0, 0], sizes = [1, 4, 4], strides = [1, 1, 1]} : vector<25x4x4xbf16> to vector<1x4x4xbf16>
    %130 = vector.shape_cast %129 : vector<1x4x4xbf16> to vector<4x4xbf16>
    %cst_96 = arith.constant dense<0.000000e+00> : vector<32x4xf32>
    %131 = tpu.matmul %12, %130, %cst_96 {dimension_numbers = #tpu.dot_dimension_numbers<[1], [0], [0], [1], [0, 0, 1, 1], [], []>} : vector<32x4xbf16>, vector<4x4xbf16>, vector<32x4xf32> -> vector<32x4xf32>
    %c0_97 = arith.constant 0 : index
    %c0_98 = arith.constant 0 : index
    %132 = vector.load %arg6[%c0_97, %c0_98] : memref<32x4xf32, #tpu.memory_space<vmem>>, vector<32x4xf32>
    %133 = arith.addf %132, %131 : vector<32x4xf32>
    %c0_99 = arith.constant 0 : index
    %c0_100 = arith.constant 0 : index
    %134 = vector.load %arg6[%c0_99, %c0_100] : memref<32x4xf32, #tpu.memory_space<vmem>>, vector<32x4xf32>
    tpu.vector_store %arg6[%c0_99, %c0_100], %133 {strides = array<i32>} : memref<32x4xf32, #tpu.memory_space<vmem>>, vector<32x4xf32>,
    %135 = vector.extract_strided_slice %3 {offsets = [24, 0, 0], sizes = [1, 4, 4], strides = [1, 1, 1]} : vector<25x4x4xbf16> to vector<1x4x4xbf16>
    %136 = vector.shape_cast %135 : vector<1x4x4xbf16> to vector<4x4xbf16>
    %cst_101 = arith.constant dense<0.000000e+00> : vector<32x4xf32>
    %137 = tpu.matmul %14, %136, %cst_101 {dimension_numbers = #tpu.dot_dimension_numbers<[1], [0], [0], [1], [0, 0, 1, 1], [], []>} : vector<32x4xbf16>, vector<4x4xbf16>, vector<32x4xf32> -> vector<32x4xf32>
    %c0_102 = arith.constant 0 : index
    %c0_103 = arith.constant 0 : index
    %138 = vector.load %arg6[%c0_102, %c0_103] : memref<32x4xf32, #tpu.memory_space<vmem>>, vector<32x4xf32>
    %139 = arith.addf %138, %137 : vector<32x4xf32>
    %c0_104 = arith.constant 0 : index
    %c0_105 = arith.constant 0 : index
    %140 = vector.load %arg6[%c0_104, %c0_105] : memref<32x4xf32, #tpu.memory_space<vmem>>, vector<32x4xf32>
    tpu.vector_store %arg6[%c0_104, %c0_105], %139 {strides = array<i32>} : memref<32x4xf32, #tpu.memory_space<vmem>>, vector<32x4xf32>,
    %c0_106 = arith.constant 0 : index
    %c0_107 = arith.constant 0 : index
    %141 = vector.load %arg6[%c0_106, %c0_107] : memref<32x4xf32, #tpu.memory_space<vmem>>, vector<32x4xf32>
    %cst_108 = arith.constant -5.000000e-01 : f32
    %142 = vector.broadcast %cst_108 : f32 to vector<32x4xf32>
    %143 = arith.mulf %141, %142 : vector<32x4xf32>
    %144 = arith.maximumf %141, %143 : vector<32x4xf32>
    %c4 = arith.constant 4 : index
    %c0_109 = arith.constant 0 : index
    %c0_110 = arith.constant 0 : index
    %145 = vector.load %arg5[%c4, %c0_109, %c0_110] : memref<9x32x4xf32, #tpu.memory_space<vmem>>, vector<1x32x4xf32>
    %146 = vector.shape_cast %145 : vector<1x32x4xf32> to vector<32x4xf32>
    %147 = vector.shape_cast %144 : vector<32x4xf32> to vector<1x32x4xf32>
    tpu.vector_store %arg5[%c4, %c0_109, %c0_110], %147 {strides = array<i32>} : memref<9x32x4xf32, #tpu.memory_space<vmem>>, vector<1x32x4xf32>,
    %148 = vector.extract_strided_slice %3 {offsets = [7, 0, 0], sizes = [1, 4, 4], strides = [1, 1, 1]} : vector<25x4x4xbf16> to vector<1x4x4xbf16>
    %149 = vector.shape_cast %148 : vector<1x4x4xbf16> to vector<4x4xbf16>
    %cst_111 = arith.constant dense<0.000000e+00> : vector<32x4xf32>
    %150 = tpu.matmul %8, %149, %cst_111 {dimension_numbers = #tpu.dot_dimension_numbers<[1], [0], [0], [1], [0, 0, 1, 1], [], []>} : vector<32x4xbf16>, vector<4x4xbf16>, vector<32x4xf32> -> vector<32x4xf32>
    %c0_112 = arith.constant 0 : index
    %c0_113 = arith.constant 0 : index
    %151 = vector.load %arg6[%c0_112, %c0_113] : memref<32x4xf32, #tpu.memory_space<vmem>>, vector<32x4xf32>
    tpu.vector_store %arg6[%c0_112, %c0_113], %150 {strides = array<i32>} : memref<32x4xf32, #tpu.memory_space<vmem>>, vector<32x4xf32>,
    %152 = vector.extract_strided_slice %3 {offsets = [22, 0, 0], sizes = [1, 4, 4], strides = [1, 1, 1]} : vector<25x4x4xbf16> to vector<1x4x4xbf16>
    %153 = vector.shape_cast %152 : vector<1x4x4xbf16> to vector<4x4xbf16>
    %cst_114 = arith.constant dense<0.000000e+00> : vector<32x4xf32>
    %154 = tpu.matmul %12, %153, %cst_114 {dimension_numbers = #tpu.dot_dimension_numbers<[1], [0], [0], [1], [0, 0, 1, 1], [], []>} : vector<32x4xbf16>, vector<4x4xbf16>, vector<32x4xf32> -> vector<32x4xf32>
    %c0_115 = arith.constant 0 : index
    %c0_116 = arith.constant 0 : index
    %155 = vector.load %arg6[%c0_115, %c0_116] : memref<32x4xf32, #tpu.memory_space<vmem>>, vector<32x4xf32>
    %156 = arith.addf %155, %154 : vector<32x4xf32>
    %c0_117 = arith.constant 0 : index
    %c0_118 = arith.constant 0 : index
    %157 = vector.load %arg6[%c0_117, %c0_118] : memref<32x4xf32, #tpu.memory_space<vmem>>, vector<32x4xf32>
    tpu.vector_store %arg6[%c0_117, %c0_118], %156 {strides = array<i32>} : memref<32x4xf32, #tpu.memory_space<vmem>>, vector<32x4xf32>,
    %c0_119 = arith.constant 0 : index
    %c0_120 = arith.constant 0 : index
    %158 = vector.load %arg6[%c0_119, %c0_120] : memref<32x4xf32, #tpu.memory_space<vmem>>, vector<32x4xf32>
    %cst_121 = arith.constant -5.000000e-01 : f32
    %159 = vector.broadcast %cst_121 : f32 to vector<32x4xf32>
    %160 = arith.mulf %158, %159 : vector<32x4xf32>
    %161 = arith.maximumf %158, %160 : vector<32x4xf32>
    %c5 = arith.constant 5 : index
    %c0_122 = arith.constant 0 : index
    %c0_123 = arith.constant 0 : index
    %162 = vector.load %arg5[%c5, %c0_122, %c0_123] : memref<9x32x4xf32, #tpu.memory_space<vmem>>, vector<1x32x4xf32>
    %163 = vector.shape_cast %162 : vector<1x32x4xf32> to vector<32x4xf32>
    %164 = vector.shape_cast %161 : vector<32x4xf32> to vector<1x32x4xf32>
    tpu.vector_store %arg5[%c5, %c0_122, %c0_123], %164 {strides = array<i32>} : memref<9x32x4xf32, #tpu.memory_space<vmem>>, vector<1x32x4xf32>,
    %165 = vector.extract_strided_slice %3 {offsets = [10, 0, 0], sizes = [1, 4, 4], strides = [1, 1, 1]} : vector<25x4x4xbf16> to vector<1x4x4xbf16>
    %166 = vector.shape_cast %165 : vector<1x4x4xbf16> to vector<4x4xbf16>
    %cst_124 = arith.constant dense<0.000000e+00> : vector<32x4xf32>
    %167 = tpu.matmul %8, %166, %cst_124 {dimension_numbers = #tpu.dot_dimension_numbers<[1], [0], [0], [1], [0, 0, 1, 1], [], []>} : vector<32x4xbf16>, vector<4x4xbf16>, vector<32x4xf32> -> vector<32x4xf32>
    %c0_125 = arith.constant 0 : index
    %c0_126 = arith.constant 0 : index
    %168 = vector.load %arg6[%c0_125, %c0_126] : memref<32x4xf32, #tpu.memory_space<vmem>>, vector<32x4xf32>
    tpu.vector_store %arg6[%c0_125, %c0_126], %167 {strides = array<i32>} : memref<32x4xf32, #tpu.memory_space<vmem>>, vector<32x4xf32>,
    %169 = vector.extract_strided_slice %3 {offsets = [13, 0, 0], sizes = [1, 4, 4], strides = [1, 1, 1]} : vector<25x4x4xbf16> to vector<1x4x4xbf16>
    %170 = vector.shape_cast %169 : vector<1x4x4xbf16> to vector<4x4xbf16>
    %cst_127 = arith.constant dense<0.000000e+00> : vector<32x4xf32>
    %171 = tpu.matmul %10, %170, %cst_127 {dimension_numbers = #tpu.dot_dimension_numbers<[1], [0], [0], [1], [0, 0, 1, 1], [], []>} : vector<32x4xbf16>, vector<4x4xbf16>, vector<32x4xf32> -> vector<32x4xf32>
    %c0_128 = arith.constant 0 : index
    %c0_129 = arith.constant 0 : index
    %172 = vector.load %arg6[%c0_128, %c0_129] : memref<32x4xf32, #tpu.memory_space<vmem>>, vector<32x4xf32>
    %173 = arith.addf %172, %171 : vector<32x4xf32>
    %c0_130 = arith.constant 0 : index
    %c0_131 = arith.constant 0 : index
    %174 = vector.load %arg6[%c0_130, %c0_131] : memref<32x4xf32, #tpu.memory_space<vmem>>, vector<32x4xf32>
    tpu.vector_store %arg6[%c0_130, %c0_131], %173 {strides = array<i32>} : memref<32x4xf32, #tpu.memory_space<vmem>>, vector<32x4xf32>,
    %c0_132 = arith.constant 0 : index
    %c0_133 = arith.constant 0 : index
    %175 = vector.load %arg6[%c0_132, %c0_133] : memref<32x4xf32, #tpu.memory_space<vmem>>, vector<32x4xf32>
    %cst_134 = arith.constant -5.000000e-01 : f32
    %176 = vector.broadcast %cst_134 : f32 to vector<32x4xf32>
    %177 = arith.mulf %175, %176 : vector<32x4xf32>
    %178 = arith.maximumf %175, %177 : vector<32x4xf32>
    %c6 = arith.constant 6 : index
    %c0_135 = arith.constant 0 : index
    %c0_136 = arith.constant 0 : index
    %179 = vector.load %arg5[%c6, %c0_135, %c0_136] : memref<9x32x4xf32, #tpu.memory_space<vmem>>, vector<1x32x4xf32>
    %180 = vector.shape_cast %179 : vector<1x32x4xf32> to vector<32x4xf32>
    %181 = vector.shape_cast %178 : vector<32x4xf32> to vector<1x32x4xf32>
    tpu.vector_store %arg5[%c6, %c0_135, %c0_136], %181 {strides = array<i32>} : memref<9x32x4xf32, #tpu.memory_space<vmem>>, vector<1x32x4xf32>,
    %182 = vector.extract_strided_slice %3 {offsets = [11, 0, 0], sizes = [1, 4, 4], strides = [1, 1, 1]} : vector<25x4x4xbf16> to vector<1x4x4xbf16>
    %183 = vector.shape_cast %182 : vector<1x4x4xbf16> to vector<4x4xbf16>
    %cst_137 = arith.constant dense<0.000000e+00> : vector<32x4xf32>
    %184 = tpu.matmul %8, %183, %cst_137 {dimension_numbers = #tpu.dot_dimension_numbers<[1], [0], [0], [1], [0, 0, 1, 1], [], []>} : vector<32x4xbf16>, vector<4x4xbf16>, vector<32x4xf32> -> vector<32x4xf32>
    %c0_138 = arith.constant 0 : index
    %c0_139 = arith.constant 0 : index
    %185 = vector.load %arg6[%c0_138, %c0_139] : memref<32x4xf32, #tpu.memory_space<vmem>>, vector<32x4xf32>
    tpu.vector_store %arg6[%c0_138, %c0_139], %184 {strides = array<i32>} : memref<32x4xf32, #tpu.memory_space<vmem>>, vector<32x4xf32>,
    %186 = vector.extract_strided_slice %3 {offsets = [14, 0, 0], sizes = [1, 4, 4], strides = [1, 1, 1]} : vector<25x4x4xbf16> to vector<1x4x4xbf16>
    %187 = vector.shape_cast %186 : vector<1x4x4xbf16> to vector<4x4xbf16>
    %cst_140 = arith.constant dense<0.000000e+00> : vector<32x4xf32>
    %188 = tpu.matmul %10, %187, %cst_140 {dimension_numbers = #tpu.dot_dimension_numbers<[1], [0], [0], [1], [0, 0, 1, 1], [], []>} : vector<32x4xbf16>, vector<4x4xbf16>, vector<32x4xf32> -> vector<32x4xf32>
    %c0_141 = arith.constant 0 : index
    %c0_142 = arith.constant 0 : index
    %189 = vector.load %arg6[%c0_141, %c0_142] : memref<32x4xf32, #tpu.memory_space<vmem>>, vector<32x4xf32>
    %190 = arith.addf %189, %188 : vector<32x4xf32>
    %c0_143 = arith.constant 0 : index
    %c0_144 = arith.constant 0 : index
    %191 = vector.load %arg6[%c0_143, %c0_144] : memref<32x4xf32, #tpu.memory_space<vmem>>, vector<32x4xf32>
    tpu.vector_store %arg6[%c0_143, %c0_144], %190 {strides = array<i32>} : memref<32x4xf32, #tpu.memory_space<vmem>>, vector<32x4xf32>,
    %c0_145 = arith.constant 0 : index
    %c0_146 = arith.constant 0 : index
    %192 = vector.load %arg6[%c0_145, %c0_146] : memref<32x4xf32, #tpu.memory_space<vmem>>, vector<32x4xf32>
    %cst_147 = arith.constant -5.000000e-01 : f32
    %193 = vector.broadcast %cst_147 : f32 to vector<32x4xf32>
    %194 = arith.mulf %192, %193 : vector<32x4xf32>
    %195 = arith.maximumf %192, %194 : vector<32x4xf32>
    %c7 = arith.constant 7 : index
    %c0_148 = arith.constant 0 : index
    %c0_149 = arith.constant 0 : index
    %196 = vector.load %arg5[%c7, %c0_148, %c0_149] : memref<9x32x4xf32, #tpu.memory_space<vmem>>, vector<1x32x4xf32>
    %197 = vector.shape_cast %196 : vector<1x32x4xf32> to vector<32x4xf32>
    %198 = vector.shape_cast %195 : vector<32x4xf32> to vector<1x32x4xf32>
    tpu.vector_store %arg5[%c7, %c0_148, %c0_149], %198 {strides = array<i32>} : memref<9x32x4xf32, #tpu.memory_space<vmem>>, vector<1x32x4xf32>,
    %199 = vector.extract_strided_slice %3 {offsets = [12, 0, 0], sizes = [1, 4, 4], strides = [1, 1, 1]} : vector<25x4x4xbf16> to vector<1x4x4xbf16>
    %200 = vector.shape_cast %199 : vector<1x4x4xbf16> to vector<4x4xbf16>
    %cst_150 = arith.constant dense<0.000000e+00> : vector<32x4xf32>
    %201 = tpu.matmul %8, %200, %cst_150 {dimension_numbers = #tpu.dot_dimension_numbers<[1], [0], [0], [1], [0, 0, 1, 1], [], []>} : vector<32x4xbf16>, vector<4x4xbf16>, vector<32x4xf32> -> vector<32x4xf32>
    %c0_151 = arith.constant 0 : index
    %c0_152 = arith.constant 0 : index
    %202 = vector.load %arg6[%c0_151, %c0_152] : memref<32x4xf32, #tpu.memory_space<vmem>>, vector<32x4xf32>
    tpu.vector_store %arg6[%c0_151, %c0_152], %201 {strides = array<i32>} : memref<32x4xf32, #tpu.memory_space<vmem>>, vector<32x4xf32>,
    %c0_153 = arith.constant 0 : index
    %c0_154 = arith.constant 0 : index
    %203 = vector.load %arg6[%c0_153, %c0_154] : memref<32x4xf32, #tpu.memory_space<vmem>>, vector<32x4xf32>
    %cst_155 = arith.constant -5.000000e-01 : f32
    %204 = vector.broadcast %cst_155 : f32 to vector<32x4xf32>
    %205 = arith.mulf %203, %204 : vector<32x4xf32>
    %206 = arith.maximumf %203, %205 : vector<32x4xf32>
    %c8 = arith.constant 8 : index
    %c0_156 = arith.constant 0 : index
    %c0_157 = arith.constant 0 : index
    %207 = vector.load %arg5[%c8, %c0_156, %c0_157] : memref<9x32x4xf32, #tpu.memory_space<vmem>>, vector<1x32x4xf32>
    %208 = vector.shape_cast %207 : vector<1x32x4xf32> to vector<32x4xf32>
    %209 = vector.shape_cast %206 : vector<32x4xf32> to vector<1x32x4xf32>
    tpu.vector_store %arg5[%c8, %c0_156, %c0_157], %209 {strides = array<i32>} : memref<9x32x4xf32, #tpu.memory_space<vmem>>, vector<1x32x4xf32>,
    return
  }
  func.func @transform_0(%arg0: i32, %arg1: i32, %arg2: i32) -> (i32, i32, i32, i32) {
    %c2_i32 = arith.constant 2 : i32
    %0 = arith.muli %arg0, %c2_i32 : i32
    %1 = arith.addi %0, %arg1 : i32
    %c0_i32 = arith.constant 0 : i32
    %c0_i32_0 = arith.constant 0 : i32
    %c0_i32_1 = arith.constant 0 : i32
    %c0_i32_2 = arith.constant 0 : i32
    return %1, %c0_i32, %c0_i32_0, %c0_i32_1 : i32, i32, i32, i32
  }
  func.func @transform_1(%arg0: i32, %arg1: i32, %arg2: i32) -> (i32, i32, i32, i32) {
    %c0_i32 = arith.constant 0 : i32
    %c0_i32_0 = arith.constant 0 : i32
    %c0_i32_1 = arith.constant 0 : i32
    %c0_i32_2 = arith.constant 0 : i32
    return %arg1, %c0_i32, %c0_i32_0, %c0_i32_1 : i32, i32, i32, i32
  }
  func.func @transform_2(%arg0: i32, %arg1: i32, %arg2: i32) -> (i32, i32, i32) {
    %c2_i32 = arith.constant 2 : i32
    %0 = arith.muli %arg0, %c2_i32 : i32
    %1 = arith.addi %0, %arg1 : i32
    %c0_i32 = arith.constant 0 : i32
    %c0_i32_0 = arith.constant 0 : i32
    return %1, %arg2, %c0_i32 : i32, i32, i32
  }
}

</mosaic_0001>

<llo_original>
// kernel: tpu_custom_call.1
$region0: #{tpu_custom_call.1}
  #allocation0 [shape = 'u32[]', space=smem, size = 0x4, offset = 0x4, fixed_abs, tag = 'smem constant byte address 0x4 - core index']
  #allocation1 [shape = 'u32[144,128]{1,0:T(1,128)}', space=vmem, size = 0x12000, scoped, tag = 'internal scratch']
  #allocation2 [shape = 'f32[32,4]{1,0:T(8,128)}', space=vmem, size = 0x4000, scoped, tag = 'scratch operand']
  %s0 = inlined_call_operand.vmem [shape: bf16[4,9,9,4], index: 0, kind: input, shape index: {}]
  %s1 = inlined_call_operand.vmem [shape: bf16[2,25,4,4], index: 1, kind: input, shape index: {}]
  %s2 = inlined_call_operand.vmem [shape: f32[36,64,4], index: 2, kind: output, shape index: {}]
  %s3 = sld [smem:[#allocation0]]
  $region75: #{tpu_custom_call.1} parent=0
    _
  %s5 = ssub.s32 1, %s3
  %s6 = scalar_select 0, %s5, %s3
  $region1: #{tpu_custom_call.1} parent=0
    #allocation3 [shape = 'u8[294912]{0}', space=vmem, size = 0x48000, scoped, tag = 'output window, operand 0']
    loop: start=0, step=1, limit=10
    $region2: #{tpu_custom_call.1} parent=1 // loop_pre_header
      _
    $region3: #{tpu_custom_call.1} parent=1 // loop_header
      %s8 = sphi 0, %s12
      %p9 = scmp.ge.s32.totalorder %s8, 10
      %s15 = sphi 0, %s34
      %s16 = sphi 0, %s30
      %s17 = sphi 0, %s26
      %s18 = sphi 0, %s15
      %s19 = sphi 0, %s16
      %s20 = sphi 0, %s17
      %s21 = sphi 0, %s18
      %s22 = sphi 0, %s19
      %s23 = sphi 0, %s20
      %s41 = sphi 0, %s43
      %s44 = sphi 0, %s41
      %s45 = sphi 0, %s44
      %s61 = sphi 0, %s45
      %s67 = sphi 0, %s69
      %s70 = sphi 0, %s67
      %s71 = sphi 0, %s70
      %s87 = sphi 0, %s71
      %s99 = sphi 0, %s101
      %s102 = sphi 0, %s99
      %s103 = sphi 0, %s102
      %s119 = sphi 0, %s103
    $region4: #{tpu_custom_call.1} parent=1 // loop_header_branch
      %11 = sbr.rel (%p9) target = $region8
    $region5: #{tpu_custom_call.1} parent=1 // loop_body
      %s13 = ssub.s32 %s8, 1
      %s14 = ssub.s32 %s8, 2
      %s24 = sadd.s32 1, %s17
      %p25 = scmp.ge.s32.totalorder %s24, 2
      %s26 = scalar_select %p25, 0, %s24
      %s27 = sadd.s32 1, %s16
      %s28 = scalar_select %p25, %s27, %s16
      %p29 = scmp.ge.s32.totalorder %s28, 2
      %s30 = scalar_select %p29, 0, %s28
      %s31 = sadd.s32 1, %s15
      %s32 = scalar_select %p29, %s31, %s15
      %p33 = scmp.ge.s32.totalorder %s32, 2
      %s34 = scalar_select %p33, 0, %s32
      %s35 = smul.u32 %s15, 2
      %s36 = sadd.s32 %s35, %s16
      %s37 = smul.u32 %s34, 2
      %s38 = sadd.s32 %s37, %s30
      %s39 = ssub.s32 %s36, %s38
      %p40 = scmp.eq.s32.totalorder %s39, 0
      %s42 = sadd.s32 %s41, 1
      %s43 = scalar_select %p40, %s41, %s42
      %p46 = pneg %p40
      %p47 = scmp.eq.s32.totalorder %s8, 7
      %p48 = por %p46, %p47
      %p49 = scmp.ne.s32.totalorder %s41, %s44
      %p50 = scmp.eq.s32.totalorder %s8, 0
      %p51 = por %p49, %p50
      %p52 = scmp.ne.s32.totalorder %s41, %s44
      %p53 = scmp.eq.s32.totalorder %s13, 7
      %p54 = por %p52, %p53
      %p55 = scmp.ne.s32.totalorder %s44, %s45
      %p56 = scmp.eq.s32.totalorder %s13, 0
      %p57 = por %p55, %p56
      %p58 = scmp.ne.s32.totalorder %s44, %s45
      %p59 = scmp.eq.s32.totalorder %s14, 7
      %p60 = por %p58, %p59
      %p62 = scmp.ne.s32.totalorder %s45, %s61
      %p63 = scmp.eq.s32.totalorder %s14, 0
      %p64 = por %p62, %p63
      %s65 = ssub.s32 %s16, %s30
      %p66 = scmp.eq.s32.totalorder %s65, 0
      %s68 = sadd.s32 %s67, 1
      %s69 = scalar_select %p66, %s67, %s68
      %p72 = pneg %p66
      %p73 = scmp.eq.s32.totalorder %s8, 7
      %p74 = por %p72, %p73
      %p75 = scmp.ne.s32.totalorder %s67, %s70
      %p76 = scmp.eq.s32.totalorder %s8, 0
      %p77 = por %p75, %p76
      %p78 = scmp.ne.s32.totalorder %s67, %s70
      %p79 = scmp.eq.s32.totalorder %s13, 7
      %p80 = por %p78, %p79
      %p81 = scmp.ne.s32.totalorder %s70, %s71
      %p82 = scmp.eq.s32.totalorder %s13, 0
      %p83 = por %p81, %p82
      %p84 = scmp.ne.s32.totalorder %s70, %s71
      %p85 = scmp.eq.s32.totalorder %s14, 7
      %p86 = por %p84, %p85
      %p88 = scmp.ne.s32.totalorder %s71, %s87
      %p89 = scmp.eq.s32.totalorder %s14, 0
      %p90 = por %p88, %p89
      %s91 = smul.u32 %s15, 2
      %s92 = sadd.s32 %s91, %s16
      %s93 = smul.u32 %s34, 2
      %s94 = sadd.s32 %s93, %s30
      %s95 = ssub.s32 %s92, %s94
      %s96 = ssub.s32 %s17, %s26
      %s97 = sor.u32 %s95, %s96
      %p98 = scmp.eq.s32.totalorder %s97, 0
      %s100 = sadd.s32 %s99, 1
      %s101 = scalar_select %p98, %s99, %s100
      %p104 = pneg %p98
      %p105 = scmp.eq.s32.totalorder %s8, 7
      %p106 = por %p104, %p105
      %p107 = scmp.ne.s32.totalorder %s99, %s102
      %p108 = scmp.eq.s32.totalorder %s8, 0
      %p109 = por %p107, %p108
      %p110 = scmp.ne.s32.totalorder %s99, %s102
      %p111 = scmp.eq.s32.totalorder %s13, 7
      %p112 = por %p110, %p111
      %p113 = scmp.ne.s32.totalorder %s102, %s103
      %p114 = scmp.eq.s32.totalorder %s13, 0
      %p115 = por %p113, %p114
      %p116 = scmp.ne.s32.totalorder %s102, %s103
      %p117 = scmp.eq.s32.totalorder %s14, 7
      %p118 = por %p116, %p117
      %p120 = scmp.ne.s32.totalorder %s103, %s119
      %p121 = scmp.eq.s32.totalorder %s14, 0
      %p122 = por %p120, %p121
      %p123 = scmp.le.s32.totalorder 1, %s8
      %p124 = scmp.lt.s32.totalorder %s8, 9
      %p125 = pnand %p123, %p124
      %p126 = pneg %p125
      // Predicated region
      $region9: #{tpu_custom_call.1} parent=5 // pred_check
        _
      $region10: #{tpu_custom_call.1} parent=5 // pred_check_branch
        %128 = sbr.rel (%p125) target = $region12
      $region11: #{tpu_custom_call.1} parent=5 // pred_region
        %s129 = ssub.s32 %s8, 1
      $region12: #{tpu_custom_call.1} parent=5 // pred_fallthru
        _
      %p130 = scmp.lt.s32.totalorder %s8, 8
      // Predicated region
      $region13: #{tpu_custom_call.1} parent=5 // pred_check
        %p131 = pneg %p130
      $region14: #{tpu_custom_call.1} parent=5 // pred_check_branch
        %133 = sbr.rel (%p131) target = $region16
      $region15: #{tpu_custom_call.1} parent=5 // pred_region
        // Predicated region
        $region17: #{tpu_custom_call.1} parent=15 // pred_check
          %p134 = pneg %p51
        $region18: #{tpu_custom_call.1} parent=15 // pred_check_branch
          %136 = sbr.rel (%p134) target = $region20
        $region19: #{tpu_custom_call.1} parent=15 // pred_region
          %s137 = smul.u32 %s15, 2
          %s138 = sadd.s32 %s137, %s16
          %p139 = scmp.lt.s32.totalorder %s138, 3
          %s140 = scalar_select %p139, %s138, 3
          %s141 = smul.addr %s140, 18
          %s142 = smul.addr %s141, 4
          %s143 = scalar_lea.vmem %s0, %s142
          %s144 = smul.u32 %s15, 2
          %s145 = sadd.s32 %s144, %s16
        $region20: #{tpu_custom_call.1} parent=15 // pred_fallthru
          _
        // Predicated region
        $region21: #{tpu_custom_call.1} parent=15 // pred_check
          %p146 = pneg %p77
        $region22: #{tpu_custom_call.1} parent=15 // pred_check_branch
          %148 = sbr.rel (%p146) target = $region24
        $region23: #{tpu_custom_call.1} parent=15 // pred_region
          %p149 = scmp.lt.s32.totalorder %s16, 1
          %s150 = scalar_select %p149, %s16, 1
          %s151 = smul.addr %s150, 25
          %s152 = smul.addr %s151, 2
          %s153 = scalar_lea.vmem %s1, %s152
        $region24: #{tpu_custom_call.1} parent=15 // pred_fallthru
          _
      $region16: #{tpu_custom_call.1} parent=5 // pred_fallthru
        _
      %p154 = scmp.le.s32.totalorder 1, %s8
      %p155 = scmp.lt.s32.totalorder %s8, 9
      %p156 = pnand %p154, %p155
      %p157 = pneg %p156
      // Predicated region
      $region25: #{tpu_custom_call.1} parent=5 // pred_check
        _
      $region26: #{tpu_custom_call.1} parent=5 // pred_check_branch
        %159 = sbr.rel (%p156) target = $region28
      $region27: #{tpu_custom_call.1} parent=5 // pred_region
        %s160 = ssub.s32 %s8, 1
        %s161 = smul.u32 %s18, 2
        %s162 = sadd.s32 %s161, %s19
        %p163 = scmp.lt.s32.totalorder %s162, 3
        %s164 = scalar_select %p163, %s162, 3
        %s165 = smul.addr %s164, 18
        %s166 = smul.addr %s165, 4
        %s167 = scalar_lea.vmem %s0, %s166
        %p168 = pneg %p57
        %p169 = pneg %p54
        %p170 = scmp.lt.s32.totalorder %s19, 1
        %s171 = scalar_select %p170, %s19, 1
        %s172 = smul.addr %s171, 25
        %s173 = smul.addr %s172, 2
        %s174 = scalar_lea.vmem %s1, %s173
        %p175 = pneg %p83
        %p176 = pneg %p80
        %p177 = pneg %p115
        %p178 = pneg %p112
        %s179 = sand.u32 %s102, 1
        %s180 = sand.u32 %s102, 1
        %s181 = smul.addr %s180, 288
        %s182 = scalar_lea.vmem [#allocation3], %s181
        %s183 = smul.u32 %s18, 2
        %s184 = sadd.s32 %s183, %s19
        %p185 = scmp.lt.s32.totalorder %s184, 3
        %s186 = scalar_select %p185, %s184, 3
        %s187 = smul.addr %s186, 18
        %s188 = smul.addr %s187, 4
        %s189 = scalar_lea.vmem %s0, %s188
        %s190 = smul.u32 %s18, 2
        %s191 = sadd.s32 %s190, %s19
        %p192 = scmp.lt.s32.totalorder %s19, 1
        %s193 = scalar_select %p192, %s19, 1
        %s194 = smul.addr %s193, 25
        %s195 = smul.addr %s194, 2
        %s196 = scalar_lea.vmem %s1, %s195
        %s197 = smul.u32 %s18, 2
        %s198 = sadd.s32 %s197, %s19
        %s199 = smul.u32 9, %s198
        %s200 = smul.u32 4, %s20
        %s202 = smul.u32 %s20, 4
        %v203 = vld [vmem:[%s196] sm:$0x3]
        %v204 = vld [vmem:[%s196 + $0x2] sm:$0x3]
        %v205 = vld [vmem:[%s196 + $0x4] sm:$0x3]
        %v206 = vld [vmem:[%s196 + $0x6] sm:$0x3]
        %v207 = vld [vmem:[%s196 + $0x8] sm:$0x3]
        %v208 = vld [vmem:[%s196 + $0xa] sm:$0x3]
        %v209 = vld [vmem:[%s196 + $0xc] sm:$0x3]
        %v210 = vld [vmem:[%s196 + $0xe] sm:$0x3]
        %v211 = vld [vmem:[%s196 + $0x10] sm:$0x3]
        %v212 = vld [vmem:[%s196 + $0x12] sm:$0x3]
        %v213 = vld [vmem:[%s196 + $0x14] sm:$0x3]
        %v214 = vld [vmem:[%s196 + $0x16] sm:$0x3]
        %v215 = vld [vmem:[%s196 + $0x18] sm:$0x3]
        %v216 = vld [vmem:[%s196 + $0x1a] sm:$0x3]
        %v217 = vld [vmem:[%s196 + $0x1c] sm:$0x3]
        %v218 = vld [vmem:[%s196 + $0x1e] sm:$0x3]
        %v219 = vld [vmem:[%s196 + $0x20] sm:$0x3]
        %v220 = vld [vmem:[%s196 + $0x22] sm:$0x3]
        %v221 = vld [vmem:[%s196 + $0x24] sm:$0x3]
        %v222 = vld [vmem:[%s196 + $0x26] sm:$0x3]
        %v223 = vld [vmem:[%s196 + $0x28] sm:$0x3]
        %v224 = vld [vmem:[%s196 + $0x2a] sm:$0x3]
        %v225 = vld [vmem:[%s196 + $0x2c] sm:$0x3]
        %v226 = vld [vmem:[%s196 + $0x2e] sm:$0x3]
        %v227 = vld [vmem:[%s196 + $0x30] sm:$0x3]
        %s228 = smul.u32 %s202, 2
        %s229 = smul.addr %s228, 4
        %s230 = scalar_lea.vmem %s189, %s229
        %v231 = vld [vmem:[%s230] sm:$0xf]
        %v232 = vld [vmem:[%s230 + $0x4] sm:$0x1]
        %v233 = vld [vmem:[%s230 + $0x8] sm:$0xf]
        %v234 = vld [vmem:[%s230 + $0xc] sm:$0x1]
        %v235 = vld [vmem:[%s230 + $0x10] sm:$0xf]
        %v236 = vld [vmem:[%s230 + $0x14] sm:$0x1]
        %v237 = vld [vmem:[%s230 + $0x18] sm:$0xf]
        %v238 = vld [vmem:[%s230 + $0x1c] sm:$0x1]
        %v239 = vld [vmem:[%s230 + $0x20] sm:$0xf]
        %v240 = vld [vmem:[%s230 + $0x24] sm:$0x1]
        %vm241 = vsmask.f32 3328
        %vm242 = vsmask.f32 7440
        %vm243 = vmor %vm241, %vm242
        %v245 = vshrl.u32 %v233, 16
        %v247 = vrot.slane %v245, 4
        %v248 = vshll.u32 %v233, 16
        %v250 = vrot.slane %v248, 5
        %v251 = vor.u32 %v247, %v250
        %v252 = vrot.slane %v251, 4
        %v254 = vshll.u32 %v234, 16
        %v256 = vrot.slane %v254, 5
        %v257 = vsel %vm243, %v252, %v256
        %v259 = vshrl.u32 %v235, 16
        %v261 = vrot.slane %v259, 4
        %v262 = vshll.u32 %v235, 16
        %v264 = vrot.slane %v262, 5
        %v265 = vor.u32 %v261, %v264
        %v266 = vrot.slane %v265, 4
        %v268 = vshll.u32 %v236, 16
        %v270 = vrot.slane %v268, 5
        %v271 = vsel %vm243, %v266, %v270
        %v273 = vshrl.u32 %v237, 16
        %v275 = vrot.slane %v273, 4
        %v276 = vshll.u32 %v237, 16
        %v278 = vrot.slane %v276, 5
        %v279 = vor.u32 %v275, %v278
        %v280 = vrot.slane %v279, 4
        %v282 = vshll.u32 %v238, 16
        %v284 = vrot.slane %v282, 5
        %v285 = vsel %vm243, %v280, %v284
        %v287 = vshrl.u32 %v239, 16
        %v289 = vrot.slane %v287, 4
        %v290 = vshll.u32 %v239, 16
        %v292 = vrot.slane %v290, 5
        %v293 = vor.u32 %v289, %v292
        %v294 = vrot.slane %v293, 4
        %v296 = vshll.u32 %v240, 16
        %v298 = vrot.slane %v296, 5
        %v299 = vsel %vm243, %v294, %v298
        %v301 = vshrl.u32 %v231, 16
        %v303 = vrot.slane %v301, 4
        %v304 = vshll.u32 %v231, 16
        %v306 = vrot.slane %v304, 5
        %v307 = vor.u32 %v303, %v306
        %v308 = vrot.slane %v307, 4
        %v310 = vshll.u32 %v232, 16
        %v312 = vrot.slane %v310, 5
        %v313 = vsel %vm243, %v308, %v312
        %v314 = vunpack.c.l.b16 %v257
        %v315 = vunpack.c.l.b16 %v271
        %v316 = vunpack.c.l.b16 %v285
        %v317 = vunpack.c.l.b16 %v299
        %v318 = vpack.c.b16 %v315, %v314
        %v319 = vpack.c.b16 %v317, %v316
        %vm320 = vcmask 31744
        %v322 = vsel %vm320, %v318, 0
        %v325 = vsel %vm320, %v319, 0
        %vm327 = vcmask 1041408
        %v329 = vsel %vm327, %v203, 0
        %331 = vmatprep.subr.bf16.mxu0 0
        %332 = vmatpush1.bf16.msra.mxu0 0
        %333 = vmatprep.subr.bf16.mxu0 0
        %334 = vmatpush1.bf16.msra.mxu0 0
        %335 = vmatprep.subr.bf16.mxu0 0
        %336 = vmatpush1.bf16.msra.mxu0 0
        %337 = vmatprep.subr.bf16.mxu0 0
        %338 = vmatpush1.bf16.msra.mxu0 0
        %339 = vmatprep.subr.bf16.mxu0 0
        %340 = vmatpush1.bf16.msra.mxu0 0
        %341 = vmatprep.subr.bf16.mxu0 0
        %342 = vmatpush1.bf16.msra.mxu0 0
        %343 = vmatprep.subr.bf16.mxu0 0
        %344 = vmatpush1.bf16.msra.mxu0 0
        %345 = vmatprep.subr.bf16.mxu0 0
        %346 = vmatpush1.bf16.msra.mxu0 %v329
        %347 = vmatprep.subr.bf16.mxu0 0
        %348 = vmatpush2.bf16.msra.mxu0 0
        %349 = vmatprep.subr.bf16.mxu0 0
        %350 = vmatpush2.bf16.msra.mxu0 0
        %351 = vmatprep.subr.bf16.mxu0 0
        %352 = vmatpush2.bf16.msra.mxu0 0
        %353 = vmatprep.subr.bf16.mxu0 0
        %354 = vmatpush2.bf16.msra.mxu0 0
        %355 = vmatprep.subr.bf16.mxu0 0
        %356 = vmatpush2.bf16.msra.mxu0 0
        %357 = vmatprep.subr.bf16.mxu0 0
        %358 = vmatpush2.bf16.msra.mxu0 0
        %359 = vmatprep.subr.bf16.mxu0 0
        %360 = vmatpush2.bf16.msra.mxu0 0
        %361 = vmatprep.subr.bf16.mxu0 0
        %362 = vmatpush2.bf16.msra.mxu0 0
        %363 = vmatprep.mubr.bf16.mxu0 0
        %364 = vmatmul.mubr.bf16.gmra.mxu0 %v322
        %v365 = vpop.f32.mrf.mxu0
        %v366 = vadd.f32 0.0, %v365
        %v367 = vpop.f32.mrf.mxu0
        %v368 = vpop.f32.mrf.mxu0
        %v369 = vadd.f32 0.0, %v368
        %v370 = vpop.f32.mrf.mxu0
        %371 = vmatprep.mubr.bf16.mxu0 0
        %372 = vmatmul.mubr.bf16.gmra.mxu0 %v325
        %v373 = vpop.f32.mrf.mxu0
        %v374 = vadd.f32 0.0, %v373
        %v375 = vpop.f32.mrf.mxu0
        %v376 = vpop.f32.mrf.mxu0
        %v377 = vadd.f32 0.0, %v376
        %v378 = vpop.f32.mrf.mxu0
        %379 = vdwg.mxu0
        %380 = vst.msk [vmem:[#allocation2] sm:$0xff] %vm320, %v366
        %381 = vst.msk [vmem:[#allocation2 + $0x8] sm:$0xff] %vm320, %v369
        %382 = vst.msk [vmem:[#allocation2 + $0x10] sm:$0xff] %vm320, %v374
        %383 = vst.msk [vmem:[#allocation2 + $0x18] sm:$0xff] %vm320, %v377
        %v388 = vunpack.c.l.b16 %v233
        %v389 = vunpack.c.l.b16 %v235
        %v390 = vunpack.c.l.b16 %v237
        %v391 = vunpack.c.l.b16 %v239
        %v392 = vpack.c.b16 %v389, %v388
        %v393 = vpack.c.b16 %v391, %v390
        %v395 = vsel %vm320, %v392, 0
        %v398 = vsel %vm320, %v393, 0
        %v401 = vsel %vm327, %v206, 0
        %403 = vmatprep.subr.bf16.mxu0 0
        %404 = vmatpush1.bf16.msra.mxu0 0
        %405 = vmatprep.subr.bf16.mxu0 0
        %406 = vmatpush1.bf16.msra.mxu0 0
        %407 = vmatprep.subr.bf16.mxu0 0
        %408 = vmatpush1.bf16.msra.mxu0 0
        %409 = vmatprep.subr.bf16.mxu0 0
        %410 = vmatpush1.bf16.msra.mxu0 0
        %411 = vmatprep.subr.bf16.mxu0 0
        %412 = vmatpush1.bf16.msra.mxu0 0
        %413 = vmatprep.subr.bf16.mxu0 0
        %414 = vmatpush1.bf16.msra.mxu0 0
        %415 = vmatprep.subr.bf16.mxu0 0
        %416 = vmatpush1.bf16.msra.mxu0 0
        %417 = vmatprep.subr.bf16.mxu0 0
        %418 = vmatpush1.bf16.msra.mxu0 %v401
        %419 = vmatprep.subr.bf16.mxu0 0
        %420 = vmatpush2.bf16.msra.mxu0 0
        %421 = vmatprep.subr.bf16.mxu0 0
        %422 = vmatpush2.bf16.msra.mxu0 0
        %423 = vmatprep.subr.bf16.mxu0 0
        %424 = vmatpush2.bf16.msra.mxu0 0
        %425 = vmatprep.subr.bf16.mxu0 0
        %426 = vmatpush2.bf16.msra.mxu0 0
        %427 = vmatprep.subr.bf16.mxu0 0
        %428 = vmatpush2.bf16.msra.mxu0 0
        %429 = vmatprep.subr.bf16.mxu0 0
        %430 = vmatpush2.bf16.msra.mxu0 0
        %431 = vmatprep.subr.bf16.mxu0 0
        %432 = vmatpush2.bf16.msra.mxu0 0
        %433 = vmatprep.subr.bf16.mxu0 0
        %434 = vmatpush2.bf16.msra.mxu0 0
        %435 = vmatprep.mubr.bf16.mxu0 0
        %436 = vmatmul.mubr.bf16.gmra.mxu0 %v395
        %v437 = vpop.f32.mrf.mxu0
        %v438 = vadd.f32 0.0, %v437
        %v439 = vpop.f32.mrf.mxu0
        %v440 = vpop.f32.mrf.mxu0
        %v441 = vadd.f32 0.0, %v440
        %v442 = vpop.f32.mrf.mxu0
        %443 = vmatprep.mubr.bf16.mxu0 0
        %444 = vmatmul.mubr.bf16.gmra.mxu0 %v398
        %v445 = vpop.f32.mrf.mxu0
        %v446 = vadd.f32 0.0, %v445
        %v447 = vpop.f32.mrf.mxu0
        %v448 = vpop.f32.mrf.mxu0
        %v449 = vadd.f32 0.0, %v448
        %v450 = vpop.f32.mrf.mxu0
        %451 = vdwg.mxu0
        %v452 = vld [vmem:[#allocation2] sm:$0xff]
        %v453 = vld [vmem:[#allocation2 + $0x8] sm:$0xff]
        %v454 = vld [vmem:[#allocation2 + $0x10] sm:$0xff]
        %v455 = vld [vmem:[#allocation2 + $0x18] sm:$0xff]
        %v456 = vadd.f32 %v452, %v438
        %v457 = vadd.f32 %v453, %v441
        %v458 = vadd.f32 %v454, %v446
        %v459 = vadd.f32 %v455, %v449
        %460 = vst.msk [vmem:[#allocation2] sm:$0xff] %vm320, %v456
        %461 = vst.msk [vmem:[#allocation2 + $0x8] sm:$0xff] %vm320, %v457
        %462 = vst.msk [vmem:[#allocation2 + $0x10] sm:$0xff] %vm320, %v458
        %463 = vst.msk [vmem:[#allocation2 + $0x18] sm:$0xff] %vm320, %v459
        %v464 = vunpack.c.l.b16 %v313
        %v465 = vpack.c.b16 %v314, %v464
        %v466 = vpack.c.b16 %v316, %v315
        %v468 = vsel %vm320, %v465, 0
        %v471 = vsel %vm320, %v466, 0
        %v474 = vsel %vm327, %v218, 0
        %476 = vmatprep.subr.bf16.mxu0 0
        %477 = vmatpush1.bf16.msra.mxu0 0
        %478 = vmatprep.subr.bf16.mxu0 0
        %479 = vmatpush1.bf16.msra.mxu0 0
        %480 = vmatprep.subr.bf16.mxu0 0
        %481 = vmatpush1.bf16.msra.mxu0 0
        %482 = vmatprep.subr.bf16.mxu0 0
        %483 = vmatpush1.bf16.msra.mxu0 0
        %484 = vmatprep.subr.bf16.mxu0 0
        %485 = vmatpush1.bf16.msra.mxu0 0
        %486 = vmatprep.subr.bf16.mxu0 0
        %487 = vmatpush1.bf16.msra.mxu0 0
        %488 = vmatprep.subr.bf16.mxu0 0
        %489 = vmatpush1.bf16.msra.mxu0 0
        %490 = vmatprep.subr.bf16.mxu0 0
        %491 = vmatpush1.bf16.msra.mxu0 %v474
        %492 = vmatprep.subr.bf16.mxu0 0
        %493 = vmatpush2.bf16.msra.mxu0 0
        %494 = vmatprep.subr.bf16.mxu0 0
        %495 = vmatpush2.bf16.msra.mxu0 0
        %496 = vmatprep.subr.bf16.mxu0 0
        %497 = vmatpush2.bf16.msra.mxu0 0
        %498 = vmatprep.subr.bf16.mxu0 0
        %499 = vmatpush2.bf16.msra.mxu0 0
        %500 = vmatprep.subr.bf16.mxu0 0
        %501 = vmatpush2.bf16.msra.mxu0 0
        %502 = vmatprep.subr.bf16.mxu0 0
        %503 = vmatpush2.bf16.msra.mxu0 0
        %504 = vmatprep.subr.bf16.mxu0 0
        %505 = vmatpush2.bf16.msra.mxu0 0
        %506 = vmatprep.subr.bf16.mxu0 0
        %507 = vmatpush2.bf16.msra.mxu0 0
        %508 = vmatprep.mubr.bf16.mxu0 0
        %509 = vmatmul.mubr.bf16.gmra.mxu0 %v468
        %v510 = vpop.f32.mrf.mxu0
        %v511 = vadd.f32 0.0, %v510
        %v512 = vpop.f32.mrf.mxu0
        %v513 = vpop.f32.mrf.mxu0
        %v514 = vadd.f32 0.0, %v513
        %v515 = vpop.f32.mrf.mxu0
        %516 = vmatprep.mubr.bf16.mxu0 0
        %517 = vmatmul.mubr.bf16.gmra.mxu0 %v471
        %v518 = vpop.f32.mrf.mxu0
        %v519 = vadd.f32 0.0, %v518
        %v520 = vpop.f32.mrf.mxu0
        %v521 = vpop.f32.mrf.mxu0
        %v522 = vadd.f32 0.0, %v521
        %v523 = vpop.f32.mrf.mxu0
        %524 = vdwg.mxu0
        %v525 = vld [vmem:[#allocation2] sm:$0xff]
        %v526 = vld [vmem:[#allocation2 + $0x8] sm:$0xff]
        %v527 = vld [vmem:[#allocation2 + $0x10] sm:$0xff]
        %v528 = vld [vmem:[#allocation2 + $0x18] sm:$0xff]
        %v529 = vadd.f32 %v525, %v511
        %v530 = vadd.f32 %v526, %v514
        %v531 = vadd.f32 %v527, %v519
        %v532 = vadd.f32 %v528, %v522
        %533 = vst.msk [vmem:[#allocation2] sm:$0xff] %vm320, %v529
        %534 = vst.msk [vmem:[#allocation2 + $0x8] sm:$0xff] %vm320, %v530
        %535 = vst.msk [vmem:[#allocation2 + $0x10] sm:$0xff] %vm320, %v531
        %536 = vst.msk [vmem:[#allocation2 + $0x18] sm:$0xff] %vm320, %v532
        %v538 = vunpack.c.l.b16 %v231
        %v539 = vpack.c.b16 %v388, %v538
        %v540 = vpack.c.b16 %v390, %v389
        %v542 = vsel %vm320, %v539, 0
        %v545 = vsel %vm320, %v540, 0
        %v548 = vsel %vm327, %v221, 0
        %550 = vmatprep.subr.bf16.mxu0 0
        %551 = vmatpush1.bf16.msra.mxu0 0
        %552 = vmatprep.subr.bf16.mxu0 0
        %553 = vmatpush1.bf16.msra.mxu0 0
        %554 = vmatprep.subr.bf16.mxu0 0
        %555 = vmatpush1.bf16.msra.mxu0 0
        %556 = vmatprep.subr.bf16.mxu0 0
        %557 = vmatpush1.bf16.msra.mxu0 0
        %558 = vmatprep.subr.bf16.mxu0 0
        %559 = vmatpush1.bf16.msra.mxu0 0
        %560 = vmatprep.subr.bf16.mxu0 0
        %561 = vmatpush1.bf16.msra.mxu0 0
        %562 = vmatprep.subr.bf16.mxu0 0
        %563 = vmatpush1.bf16.msra.mxu0 0
        %564 = vmatprep.subr.bf16.mxu0 0
        %565 = vmatpush1.bf16.msra.mxu0 %v548
        %566 = vmatprep.subr.bf16.mxu0 0
        %567 = vmatpush2.bf16.msra.mxu0 0
        %568 = vmatprep.subr.bf16.mxu0 0
        %569 = vmatpush2.bf16.msra.mxu0 0
        %570 = vmatprep.subr.bf16.mxu0 0
        %571 = vmatpush2.bf16.msra.mxu0 0
        %572 = vmatprep.subr.bf16.mxu0 0
        %573 = vmatpush2.bf16.msra.mxu0 0
        %574 = vmatprep.subr.bf16.mxu0 0
        %575 = vmatpush2.bf16.msra.mxu0 0
        %576 = vmatprep.subr.bf16.mxu0 0
        %577 = vmatpush2.bf16.msra.mxu0 0
        %578 = vmatprep.subr.bf16.mxu0 0
        %579 = vmatpush2.bf16.msra.mxu0 0
        %580 = vmatprep.subr.bf16.mxu0 0
        %581 = vmatpush2.bf16.msra.mxu0 0
        %582 = vmatprep.mubr.bf16.mxu0 0
        %583 = vmatmul.mubr.bf16.gmra.mxu0 %v542
        %v584 = vpop.f32.mrf.mxu0
        %v585 = vadd.f32 0.0, %v584
        %v586 = vpop.f32.mrf.mxu0
        %v587 = vpop.f32.mrf.mxu0
        %v588 = vadd.f32 0.0, %v587
        %v589 = vpop.f32.mrf.mxu0
        %590 = vmatprep.mubr.bf16.mxu0 0
        %591 = vmatmul.mubr.bf16.gmra.mxu0 %v545
        %v592 = vpop.f32.mrf.mxu0
        %v593 = vadd.f32 0.0, %v592
        %v594 = vpop.f32.mrf.mxu0
        %v595 = vpop.f32.mrf.mxu0
        %v596 = vadd.f32 0.0, %v595
        %v597 = vpop.f32.mrf.mxu0
        %598 = vdwg.mxu0
        %v599 = vld [vmem:[#allocation2] sm:$0xff]
        %v600 = vld [vmem:[#allocation2 + $0x8] sm:$0xff]
        %v601 = vld [vmem:[#allocation2 + $0x10] sm:$0xff]
        %v602 = vld [vmem:[#allocation2 + $0x18] sm:$0xff]
        %v603 = vadd.f32 %v599, %v585
        %v604 = vadd.f32 %v600, %v588
        %v605 = vadd.f32 %v601, %v593
        %v606 = vadd.f32 %v602, %v596
        %607 = vst.msk [vmem:[#allocation2] sm:$0xff] %vm320, %v603
        %608 = vst.msk [vmem:[#allocation2 + $0x8] sm:$0xff] %vm320, %v604
        %609 = vst.msk [vmem:[#allocation2 + $0x10] sm:$0xff] %vm320, %v605
        %610 = vst.msk [vmem:[#allocation2 + $0x18] sm:$0xff] %vm320, %v606
        %v611 = vld [vmem:[#allocation2] sm:$0xff]
        %v612 = vld [vmem:[#allocation2 + $0x8] sm:$0xff]
        %v613 = vld [vmem:[#allocation2 + $0x10] sm:$0xff]
        %v614 = vld [vmem:[#allocation2 + $0x18] sm:$0xff]
        %v615 = vmul.f32 %v611, -0.5
        %v616 = vmul.f32 %v612, -0.5
        %v617 = vmul.f32 %v613, -0.5
        %v618 = vmul.f32 %v614, -0.5
        %v619 = vmax.f32 %v611, %v615
        %v620 = vmax.f32 %v612, %v616
        %v621 = vmax.f32 %v613, %v617
        %v622 = vmax.f32 %v614, %v618
        %623 = vst.msk [vmem:[%s182] sm:$0xff] %vm320, %v619
        %624 = vst.msk [vmem:[%s182 + $0x8] sm:$0xff] %vm320, %v620
        %625 = vst.msk [vmem:[%s182 + $0x10] sm:$0xff] %vm320, %v621
        %626 = vst.msk [vmem:[%s182 + $0x18] sm:$0xff] %vm320, %v622
        %v628 = vsel %vm327, %v204, 0
        %630 = vmatprep.subr.bf16.mxu0 0
        %631 = vmatpush1.bf16.msra.mxu0 0
        %632 = vmatprep.subr.bf16.mxu0 0
        %633 = vmatpush1.bf16.msra.mxu0 0
        %634 = vmatprep.subr.bf16.mxu0 0
        %635 = vmatpush1.bf16.msra.mxu0 0
        %636 = vmatprep.subr.bf16.mxu0 0
        %637 = vmatpush1.bf16.msra.mxu0 0
        %638 = vmatprep.subr.bf16.mxu0 0
        %639 = vmatpush1.bf16.msra.mxu0 0
        %640 = vmatprep.subr.bf16.mxu0 0
        %641 = vmatpush1.bf16.msra.mxu0 0
        %642 = vmatprep.subr.bf16.mxu0 0
        %643 = vmatpush1.bf16.msra.mxu0 0
        %644 = vmatprep.subr.bf16.mxu0 0
        %645 = vmatpush1.bf16.msra.mxu0 %v628
        %646 = vmatprep.subr.bf16.mxu0 0
        %647 = vmatpush2.bf16.msra.mxu0 0
        %648 = vmatprep.subr.bf16.mxu0 0
        %649 = vmatpush2.bf16.msra.mxu0 0
        %650 = vmatprep.subr.bf16.mxu0 0
        %651 = vmatpush2.bf16.msra.mxu0 0
        %652 = vmatprep.subr.bf16.mxu0 0
        %653 = vmatpush2.bf16.msra.mxu0 0
        %654 = vmatprep.subr.bf16.mxu0 0
        %655 = vmatpush2.bf16.msra.mxu0 0
        %656 = vmatprep.subr.bf16.mxu0 0
        %657 = vmatpush2.bf16.msra.mxu0 0
        %658 = vmatprep.subr.bf16.mxu0 0
        %659 = vmatpush2.bf16.msra.mxu0 0
        %660 = vmatprep.subr.bf16.mxu0 0
        %661 = vmatpush2.bf16.msra.mxu0 0
        %662 = vmatprep.mubr.bf16.mxu0 0
        %663 = vmatmul.mubr.bf16.gmra.mxu0 %v322
        %v664 = vpop.f32.mrf.mxu0
        %v665 = vadd.f32 0.0, %v664
        %v666 = vpop.f32.mrf.mxu0
        %v667 = vpop.f32.mrf.mxu0
        %v668 = vadd.f32 0.0, %v667
        %v669 = vpop.f32.mrf.mxu0
        %670 = vmatprep.mubr.bf16.mxu0 0
        %671 = vmatmul.mubr.bf16.gmra.mxu0 %v325
        %v672 = vpop.f32.mrf.mxu0
        %v673 = vadd.f32 0.0, %v672
        %v674 = vpop.f32.mrf.mxu0
        %v675 = vpop.f32.mrf.mxu0
        %v676 = vadd.f32 0.0, %v675
        %v677 = vpop.f32.mrf.mxu0
        %678 = vdwg.mxu0
        %679 = vst.msk [vmem:[#allocation2] sm:$0xff] %vm320, %v665
        %680 = vst.msk [vmem:[#allocation2 + $0x8] sm:$0xff] %vm320, %v668
        %681 = vst.msk [vmem:[#allocation2 + $0x10] sm:$0xff] %vm320, %v673
        %682 = vst.msk [vmem:[#allocation2 + $0x18] sm:$0xff] %vm320, %v676
        %v684 = vsel %vm327, %v207, 0
        %686 = vmatprep.subr.bf16.mxu0 0
        %687 = vmatpush1.bf16.msra.mxu0 0
        %688 = vmatprep.subr.bf16.mxu0 0
        %689 = vmatpush1.bf16.msra.mxu0 0
        %690 = vmatprep.subr.bf16.mxu0 0
        %691 = vmatpush1.bf16.msra.mxu0 0
        %692 = vmatprep.subr.bf16.mxu0 0
        %693 = vmatpush1.bf16.msra.mxu0 0
        %694 = vmatprep.subr.bf16.mxu0 0
        %695 = vmatpush1.bf16.msra.mxu0 0
        %696 = vmatprep.subr.bf16.mxu0 0
        %697 = vmatpush1.bf16.msra.mxu0 0
        %698 = vmatprep.subr.bf16.mxu0 0
        %699 = vmatpush1.bf16.msra.mxu0 0
        %700 = vmatprep.subr.bf16.mxu0 0
        %701 = vmatpush1.bf16.msra.mxu0 %v684
        %702 = vmatprep.subr.bf16.mxu0 0
        %703 = vmatpush2.bf16.msra.mxu0 0
        %704 = vmatprep.subr.bf16.mxu0 0
        %705 = vmatpush2.bf16.msra.mxu0 0
        %706 = vmatprep.subr.bf16.mxu0 0
        %707 = vmatpush2.bf16.msra.mxu0 0
        %708 = vmatprep.subr.bf16.mxu0 0
        %709 = vmatpush2.bf16.msra.mxu0 0
        %710 = vmatprep.subr.bf16.mxu0 0
        %711 = vmatpush2.bf16.msra.mxu0 0
        %712 = vmatprep.subr.bf16.mxu0 0
        %713 = vmatpush2.bf16.msra.mxu0 0
        %714 = vmatprep.subr.bf16.mxu0 0
        %715 = vmatpush2.bf16.msra.mxu0 0
        %716 = vmatprep.subr.bf16.mxu0 0
        %717 = vmatpush2.bf16.msra.mxu0 0
        %718 = vmatprep.mubr.bf16.mxu0 0
        %719 = vmatmul.mubr.bf16.gmra.mxu0 %v395
        %v720 = vpop.f32.mrf.mxu0
        %v721 = vadd.f32 0.0, %v720
        %v722 = vpop.f32.mrf.mxu0
        %v723 = vpop.f32.mrf.mxu0
        %v724 = vadd.f32 0.0, %v723
        %v725 = vpop.f32.mrf.mxu0
        %726 = vmatprep.mubr.bf16.mxu0 0
        %727 = vmatmul.mubr.bf16.gmra.mxu0 %v398
        %v728 = vpop.f32.mrf.mxu0
        %v729 = vadd.f32 0.0, %v728
        %v730 = vpop.f32.mrf.mxu0
        %v731 = vpop.f32.mrf.mxu0
        %v732 = vadd.f32 0.0, %v731
        %v733 = vpop.f32.mrf.mxu0
        %734 = vdwg.mxu0
        %v735 = vld [vmem:[#allocation2] sm:$0xff]
        %v736 = vld [vmem:[#allocation2 + $0x8] sm:$0xff]
        %v737 = vld [vmem:[#allocation2 + $0x10] sm:$0xff]
        %v738 = vld [vmem:[#allocation2 + $0x18] sm:$0xff]
        %v739 = vadd.f32 %v735, %v721
        %v740 = vadd.f32 %v736, %v724
        %v741 = vadd.f32 %v737, %v729
        %v742 = vadd.f32 %v738, %v732
        %743 = vst.msk [vmem:[#allocation2] sm:$0xff] %vm320, %v739
        %744 = vst.msk [vmem:[#allocation2 + $0x8] sm:$0xff] %vm320, %v740
        %745 = vst.msk [vmem:[#allocation2 + $0x10] sm:$0xff] %vm320, %v741
        %746 = vst.msk [vmem:[#allocation2 + $0x18] sm:$0xff] %vm320, %v742
        %v748 = vsel %vm327, %v219, 0
        %750 = vmatprep.subr.bf16.mxu0 0
        %751 = vmatpush1.bf16.msra.mxu0 0
        %752 = vmatprep.subr.bf16.mxu0 0
        %753 = vmatpush1.bf16.msra.mxu0 0
        %754 = vmatprep.subr.bf16.mxu0 0
        %755 = vmatpush1.bf16.msra.mxu0 0
        %756 = vmatprep.subr.bf16.mxu0 0
        %757 = vmatpush1.bf16.msra.mxu0 0
        %758 = vmatprep.subr.bf16.mxu0 0
        %759 = vmatpush1.bf16.msra.mxu0 0
        %760 = vmatprep.subr.bf16.mxu0 0
        %761 = vmatpush1.bf16.msra.mxu0 0
        %762 = vmatprep.subr.bf16.mxu0 0
        %763 = vmatpush1.bf16.msra.mxu0 0
        %764 = vmatprep.subr.bf16.mxu0 0
        %765 = vmatpush1.bf16.msra.mxu0 %v748
        %766 = vmatprep.subr.bf16.mxu0 0
        %767 = vmatpush2.bf16.msra.mxu0 0
        %768 = vmatprep.subr.bf16.mxu0 0
        %769 = vmatpush2.bf16.msra.mxu0 0
        %770 = vmatprep.subr.bf16.mxu0 0
        %771 = vmatpush2.bf16.msra.mxu0 0
        %772 = vmatprep.subr.bf16.mxu0 0
        %773 = vmatpush2.bf16.msra.mxu0 0
        %774 = vmatprep.subr.bf16.mxu0 0
        %775 = vmatpush2.bf16.msra.mxu0 0
        %776 = vmatprep.subr.bf16.mxu0 0
        %777 = vmatpush2.bf16.msra.mxu0 0
        %778 = vmatprep.subr.bf16.mxu0 0
        %779 = vmatpush2.bf16.msra.mxu0 0
        %780 = vmatprep.subr.bf16.mxu0 0
        %781 = vmatpush2.bf16.msra.mxu0 0
        %782 = vmatprep.mubr.bf16.mxu0 0
        %783 = vmatmul.mubr.bf16.gmra.mxu0 %v468
        %v784 = vpop.f32.mrf.mxu0
        %v785 = vadd.f32 0.0, %v784
        %v786 = vpop.f32.mrf.mxu0
        %v787 = vpop.f32.mrf.mxu0
        %v788 = vadd.f32 0.0, %v787
        %v789 = vpop.f32.mrf.mxu0
        %790 = vmatprep.mubr.bf16.mxu0 0
        %791 = vmatmul.mubr.bf16.gmra.mxu0 %v471
        %v792 = vpop.f32.mrf.mxu0
        %v793 = vadd.f32 0.0, %v792
        %v794 = vpop.f32.mrf.mxu0
        %v795 = vpop.f32.mrf.mxu0
        %v796 = vadd.f32 0.0, %v795
        %v797 = vpop.f32.mrf.mxu0
        %798 = vdwg.mxu0
        %v799 = vld [vmem:[#allocation2] sm:$0xff]
        %v800 = vld [vmem:[#allocation2 + $0x8] sm:$0xff]
        %v801 = vld [vmem:[#allocation2 + $0x10] sm:$0xff]
        %v802 = vld [vmem:[#allocation2 + $0x18] sm:$0xff]
        %v803 = vadd.f32 %v799, %v785
        %v804 = vadd.f32 %v800, %v788
        %v805 = vadd.f32 %v801, %v793
        %v806 = vadd.f32 %v802, %v796
        %807 = vst.msk [vmem:[#allocation2] sm:$0xff] %vm320, %v803
        %808 = vst.msk [vmem:[#allocation2 + $0x8] sm:$0xff] %vm320, %v804
        %809 = vst.msk [vmem:[#allocation2 + $0x10] sm:$0xff] %vm320, %v805
        %810 = vst.msk [vmem:[#allocation2 + $0x18] sm:$0xff] %vm320, %v806
        %v812 = vsel %vm327, %v222, 0
        %814 = vmatprep.subr.bf16.mxu0 0
        %815 = vmatpush1.bf16.msra.mxu0 0
        %816 = vmatprep.subr.bf16.mxu0 0
        %817 = vmatpush1.bf16.msra.mxu0 0
        %818 = vmatprep.subr.bf16.mxu0 0
        %819 = vmatpush1.bf16.msra.mxu0 0
        %820 = vmatprep.subr.bf16.mxu0 0
        %821 = vmatpush1.bf16.msra.mxu0 0
        %822 = vmatprep.subr.bf16.mxu0 0
        %823 = vmatpush1.bf16.msra.mxu0 0
        %824 = vmatprep.subr.bf16.mxu0 0
        %825 = vmatpush1.bf16.msra.mxu0 0
        %826 = vmatprep.subr.bf16.mxu0 0
        %827 = vmatpush1.bf16.msra.mxu0 0
        %828 = vmatprep.subr.bf16.mxu0 0
        %829 = vmatpush1.bf16.msra.mxu0 %v812
        %830 = vmatprep.subr.bf16.mxu0 0
        %831 = vmatpush2.bf16.msra.mxu0 0
        %832 = vmatprep.subr.bf16.mxu0 0
        %833 = vmatpush2.bf16.msra.mxu0 0
        %834 = vmatprep.subr.bf16.mxu0 0
        %835 = vmatpush2.bf16.msra.mxu0 0
        %836 = vmatprep.subr.bf16.mxu0 0
        %837 = vmatpush2.bf16.msra.mxu0 0
        %838 = vmatprep.subr.bf16.mxu0 0
        %839 = vmatpush2.bf16.msra.mxu0 0
        %840 = vmatprep.subr.bf16.mxu0 0
        %841 = vmatpush2.bf16.msra.mxu0 0
        %842 = vmatprep.subr.bf16.mxu0 0
        %843 = vmatpush2.bf16.msra.mxu0 0
        %844 = vmatprep.subr.bf16.mxu0 0
        %845 = vmatpush2.bf16.msra.mxu0 0
        %846 = vmatprep.mubr.bf16.mxu0 0
        %847 = vmatmul.mubr.bf16.gmra.mxu0 %v542
        %v848 = vpop.f32.mrf.mxu0
        %v849 = vadd.f32 0.0, %v848
        %v850 = vpop.f32.mrf.mxu0
        %v851 = vpop.f32.mrf.mxu0
        %v852 = vadd.f32 0.0, %v851
        %v853 = vpop.f32.mrf.mxu0
        %854 = vmatprep.mubr.bf16.mxu0 0
        %855 = vmatmul.mubr.bf16.gmra.mxu0 %v545
        %v856 = vpop.f32.mrf.mxu0
        %v857 = vadd.f32 0.0, %v856
        %v858 = vpop.f32.mrf.mxu0
        %v859 = vpop.f32.mrf.mxu0
        %v860 = vadd.f32 0.0, %v859
        %v861 = vpop.f32.mrf.mxu0
        %862 = vdwg.mxu0
        %v863 = vld [vmem:[#allocation2] sm:$0xff]
        %v864 = vld [vmem:[#allocation2 + $0x8] sm:$0xff]
        %v865 = vld [vmem:[#allocation2 + $0x10] sm:$0xff]
        %v866 = vld [vmem:[#allocation2 + $0x18] sm:$0xff]
        %v867 = vadd.f32 %v863, %v849
        %v868 = vadd.f32 %v864, %v852
        %v869 = vadd.f32 %v865, %v857
        %v870 = vadd.f32 %v866, %v860
        %871 = vst.msk [vmem:[#allocation2] sm:$0xff] %vm320, %v867
        %872 = vst.msk [vmem:[#allocation2 + $0x8] sm:$0xff] %vm320, %v868
        %873 = vst.msk [vmem:[#allocation2 + $0x10] sm:$0xff] %vm320, %v869
        %874 = vst.msk [vmem:[#allocation2 + $0x18] sm:$0xff] %vm320, %v870
        %v875 = vld [vmem:[#allocation2] sm:$0xff]
        %v876 = vld [vmem:[#allocation2 + $0x8] sm:$0xff]
        %v877 = vld [vmem:[#allocation2 + $0x10] sm:$0xff]
        %v878 = vld [vmem:[#allocation2 + $0x18] sm:$0xff]
        %v879 = vmul.f32 %v875, -0.5
        %v880 = vmul.f32 %v876, -0.5
        %v881 = vmul.f32 %v877, -0.5
        %v882 = vmul.f32 %v878, -0.5
        %v883 = vmax.f32 %v875, %v879
        %v884 = vmax.f32 %v876, %v880
        %v885 = vmax.f32 %v877, %v881
        %v886 = vmax.f32 %v878, %v882
        %s887 = scalar_lea.vmem %s182, 32 [#allocation3]
        %888 = vst.msk [vmem:[%s887] sm:$0xff] %vm320, %v883
        %889 = vst.msk [vmem:[%s887 + $0x8] sm:$0xff] %vm320, %v884
        %890 = vst.msk [vmem:[%s887 + $0x10] sm:$0xff] %vm320, %v885
        %891 = vst.msk [vmem:[%s887 + $0x18] sm:$0xff] %vm320, %v886
        %v893 = vsel %vm327, %v205, 0
        %895 = vmatprep.subr.bf16.mxu0 0
        %896 = vmatpush1.bf16.msra.mxu0 0
        %897 = vmatprep.subr.bf16.mxu0 0
        %898 = vmatpush1.bf16.msra.mxu0 0
        %899 = vmatprep.subr.bf16.mxu0 0
        %900 = vmatpush1.bf16.msra.mxu0 0
        %901 = vmatprep.subr.bf16.mxu0 0
        %902 = vmatpush1.bf16.msra.mxu0 0
        %903 = vmatprep.subr.bf16.mxu0 0
        %904 = vmatpush1.bf16.msra.mxu0 0
        %905 = vmatprep.subr.bf16.mxu0 0
        %906 = vmatpush1.bf16.msra.mxu0 0
        %907 = vmatprep.subr.bf16.mxu0 0
        %908 = vmatpush1.bf16.msra.mxu0 0
        %909 = vmatprep.subr.bf16.mxu0 0
        %910 = vmatpush1.bf16.msra.mxu0 %v893
        %911 = vmatprep.subr.bf16.mxu0 0
        %912 = vmatpush2.bf16.msra.mxu0 0
        %913 = vmatprep.subr.bf16.mxu0 0
        %914 = vmatpush2.bf16.msra.mxu0 0
        %915 = vmatprep.subr.bf16.mxu0 0
        %916 = vmatpush2.bf16.msra.mxu0 0
        %917 = vmatprep.subr.bf16.mxu0 0
        %918 = vmatpush2.bf16.msra.mxu0 0
        %919 = vmatprep.subr.bf16.mxu0 0
        %920 = vmatpush2.bf16.msra.mxu0 0
        %921 = vmatprep.subr.bf16.mxu0 0
        %922 = vmatpush2.bf16.msra.mxu0 0
        %923 = vmatprep.subr.bf16.mxu0 0
        %924 = vmatpush2.bf16.msra.mxu0 0
        %925 = vmatprep.subr.bf16.mxu0 0
        %926 = vmatpush2.bf16.msra.mxu0 0
        %927 = vmatprep.mubr.bf16.mxu0 0
        %928 = vmatmul.mubr.bf16.gmra.mxu0 %v322
        %v929 = vpop.f32.mrf.mxu0
        %v930 = vadd.f32 0.0, %v929
        %v931 = vpop.f32.mrf.mxu0
        %v932 = vpop.f32.mrf.mxu0
        %v933 = vadd.f32 0.0, %v932
        %v934 = vpop.f32.mrf.mxu0
        %935 = vmatprep.mubr.bf16.mxu0 0
        %936 = vmatmul.mubr.bf16.gmra.mxu0 %v325
        %v937 = vpop.f32.mrf.mxu0
        %v938 = vadd.f32 0.0, %v937
        %v939 = vpop.f32.mrf.mxu0
        %v940 = vpop.f32.mrf.mxu0
        %v941 = vadd.f32 0.0, %v940
        %v942 = vpop.f32.mrf.mxu0
        %943 = vdwg.mxu0
        %944 = vst.msk [vmem:[#allocation2] sm:$0xff] %vm320, %v930
        %945 = vst.msk [vmem:[#allocation2 + $0x8] sm:$0xff] %vm320, %v933
        %946 = vst.msk [vmem:[#allocation2 + $0x10] sm:$0xff] %vm320, %v938
        %947 = vst.msk [vmem:[#allocation2 + $0x18] sm:$0xff] %vm320, %v941
        %v949 = vsel %vm327, %v220, 0
        %951 = vmatprep.subr.bf16.mxu0 0
        %952 = vmatpush1.bf16.msra.mxu0 0
        %953 = vmatprep.subr.bf16.mxu0 0
        %954 = vmatpush1.bf16.msra.mxu0 0
        %955 = vmatprep.subr.bf16.mxu0 0
        %956 = vmatpush1.bf16.msra.mxu0 0
        %957 = vmatprep.subr.bf16.mxu0 0
        %958 = vmatpush1.bf16.msra.mxu0 0
        %959 = vmatprep.subr.bf16.mxu0 0
        %960 = vmatpush1.bf16.msra.mxu0 0
        %961 = vmatprep.subr.bf16.mxu0 0
        %962 = vmatpush1.bf16.msra.mxu0 0
        %963 = vmatprep.subr.bf16.mxu0 0
        %964 = vmatpush1.bf16.msra.mxu0 0
        %965 = vmatprep.subr.bf16.mxu0 0
        %966 = vmatpush1.bf16.msra.mxu0 %v949
        %967 = vmatprep.subr.bf16.mxu0 0
        %968 = vmatpush2.bf16.msra.mxu0 0
        %969 = vmatprep.subr.bf16.mxu0 0
        %970 = vmatpush2.bf16.msra.mxu0 0
        %971 = vmatprep.subr.bf16.mxu0 0
        %972 = vmatpush2.bf16.msra.mxu0 0
        %973 = vmatprep.subr.bf16.mxu0 0
        %974 = vmatpush2.bf16.msra.mxu0 0
        %975 = vmatprep.subr.bf16.mxu0 0
        %976 = vmatpush2.bf16.msra.mxu0 0
        %977 = vmatprep.subr.bf16.mxu0 0
        %978 = vmatpush2.bf16.msra.mxu0 0
        %979 = vmatprep.subr.bf16.mxu0 0
        %980 = vmatpush2.bf16.msra.mxu0 0
        %981 = vmatprep.subr.bf16.mxu0 0
        %982 = vmatpush2.bf16.msra.mxu0 0
        %983 = vmatprep.mubr.bf16.mxu0 0
        %984 = vmatmul.mubr.bf16.gmra.mxu0 %v468
        %v985 = vpop.f32.mrf.mxu0
        %v986 = vadd.f32 0.0, %v985
        %v987 = vpop.f32.mrf.mxu0
        %v988 = vpop.f32.mrf.mxu0
        %v989 = vadd.f32 0.0, %v988
        %v990 = vpop.f32.mrf.mxu0
        %991 = vmatprep.mubr.bf16.mxu0 0
        %992 = vmatmul.mubr.bf16.gmra.mxu0 %v471
        %v993 = vpop.f32.mrf.mxu0
        %v994 = vadd.f32 0.0, %v993
        %v995 = vpop.f32.mrf.mxu0
        %v996 = vpop.f32.mrf.mxu0
        %v997 = vadd.f32 0.0, %v996
        %v998 = vpop.f32.mrf.mxu0
        %999 = vdwg.mxu0
        %v1000 = vld [vmem:[#allocation2] sm:$0xff]
        %v1001 = vld [vmem:[#allocation2 + $0x8] sm:$0xff]
        %v1002 = vld [vmem:[#allocation2 + $0x10] sm:$0xff]
        %v1003 = vld [vmem:[#allocation2 + $0x18] sm:$0xff]
        %v1004 = vadd.f32 %v1000, %v986
        %v1005 = vadd.f32 %v1001, %v989
        %v1006 = vadd.f32 %v1002, %v994
        %v1007 = vadd.f32 %v1003, %v997
        %1008 = vst.msk [vmem:[#allocation2] sm:$0xff] %vm320, %v1004
        %1009 = vst.msk [vmem:[#allocation2 + $0x8] sm:$0xff] %vm320, %v1005
        %1010 = vst.msk [vmem:[#allocation2 + $0x10] sm:$0xff] %vm320, %v1006
        %1011 = vst.msk [vmem:[#allocation2 + $0x18] sm:$0xff] %vm320, %v1007
        %v1012 = vld [vmem:[#allocation2] sm:$0xff]
        %v1013 = vld [vmem:[#allocation2 + $0x8] sm:$0xff]
        %v1014 = vld [vmem:[#allocation2 + $0x10] sm:$0xff]
        %v1015 = vld [vmem:[#allocation2 + $0x18] sm:$0xff]
        %v1016 = vmul.f32 %v1012, -0.5
        %v1017 = vmul.f32 %v1013, -0.5
        %v1018 = vmul.f32 %v1014, -0.5
        %v1019 = vmul.f32 %v1015, -0.5
        %v1020 = vmax.f32 %v1012, %v1016
        %v1021 = vmax.f32 %v1013, %v1017
        %v1022 = vmax.f32 %v1014, %v1018
        %v1023 = vmax.f32 %v1015, %v1019
        %s1024 = scalar_lea.vmem %s182, 64 [#allocation3]
        %1025 = vst.msk [vmem:[%s1024] sm:$0xff] %vm320, %v1020
        %1026 = vst.msk [vmem:[%s1024 + $0x8] sm:$0xff] %vm320, %v1021
        %1027 = vst.msk [vmem:[%s1024 + $0x10] sm:$0xff] %vm320, %v1022
        %1028 = vst.msk [vmem:[%s1024 + $0x18] sm:$0xff] %vm320, %v1023
        %v1030 = vsel %vm327, %v208, 0
        %1032 = vmatprep.subr.bf16.mxu0 0
        %1033 = vmatpush1.bf16.msra.mxu0 0
        %1034 = vmatprep.subr.bf16.mxu0 0
        %1035 = vmatpush1.bf16.msra.mxu0 0
        %1036 = vmatprep.subr.bf16.mxu0 0
        %1037 = vmatpush1.bf16.msra.mxu0 0
        %1038 = vmatprep.subr.bf16.mxu0 0
        %1039 = vmatpush1.bf16.msra.mxu0 0
        %1040 = vmatprep.subr.bf16.mxu0 0
        %1041 = vmatpush1.bf16.msra.mxu0 0
        %1042 = vmatprep.subr.bf16.mxu0 0
        %1043 = vmatpush1.bf16.msra.mxu0 0
        %1044 = vmatprep.subr.bf16.mxu0 0
        %1045 = vmatpush1.bf16.msra.mxu0 0
        %1046 = vmatprep.subr.bf16.mxu0 0
        %1047 = vmatpush1.bf16.msra.mxu0 %v1030
        %1048 = vmatprep.subr.bf16.mxu0 0
        %1049 = vmatpush2.bf16.msra.mxu0 0
        %1050 = vmatprep.subr.bf16.mxu0 0
        %1051 = vmatpush2.bf16.msra.mxu0 0
        %1052 = vmatprep.subr.bf16.mxu0 0
        %1053 = vmatpush2.bf16.msra.mxu0 0
        %1054 = vmatprep.subr.bf16.mxu0 0
        %1055 = vmatpush2.bf16.msra.mxu0 0
        %1056 = vmatprep.subr.bf16.mxu0 0
        %1057 = vmatpush2.bf16.msra.mxu0 0
        %1058 = vmatprep.subr.bf16.mxu0 0
        %1059 = vmatpush2.bf16.msra.mxu0 0
        %1060 = vmatprep.subr.bf16.mxu0 0
        %1061 = vmatpush2.bf16.msra.mxu0 0
        %1062 = vmatprep.subr.bf16.mxu0 0
        %1063 = vmatpush2.bf16.msra.mxu0 0
        %1064 = vmatprep.mubr.bf16.mxu0 0
        %1065 = vmatmul.mubr.bf16.gmra.mxu0 %v322
        %v1066 = vpop.f32.mrf.mxu0
        %v1067 = vadd.f32 0.0, %v1066
        %v1068 = vpop.f32.mrf.mxu0
        %v1069 = vpop.f32.mrf.mxu0
        %v1070 = vadd.f32 0.0, %v1069
        %v1071 = vpop.f32.mrf.mxu0
        %1072 = vmatprep.mubr.bf16.mxu0 0
        %1073 = vmatmul.mubr.bf16.gmra.mxu0 %v325
        %v1074 = vpop.f32.mrf.mxu0
        %v1075 = vadd.f32 0.0, %v1074
        %v1076 = vpop.f32.mrf.mxu0
        %v1077 = vpop.f32.mrf.mxu0
        %v1078 = vadd.f32 0.0, %v1077
        %v1079 = vpop.f32.mrf.mxu0
        %1080 = vdwg.mxu0
        %1081 = vst.msk [vmem:[#allocation2] sm:$0xff] %vm320, %v1067
        %1082 = vst.msk [vmem:[#allocation2 + $0x8] sm:$0xff] %vm320, %v1070
        %1083 = vst.msk [vmem:[#allocation2 + $0x10] sm:$0xff] %vm320, %v1075
        %1084 = vst.msk [vmem:[#allocation2 + $0x18] sm:$0xff] %vm320, %v1078
        %v1086 = vsel %vm327, %v211, 0
        %1088 = vmatprep.subr.bf16.mxu0 0
        %1089 = vmatpush1.bf16.msra.mxu0 0
        %1090 = vmatprep.subr.bf16.mxu0 0
        %1091 = vmatpush1.bf16.msra.mxu0 0
        %1092 = vmatprep.subr.bf16.mxu0 0
        %1093 = vmatpush1.bf16.msra.mxu0 0
        %1094 = vmatprep.subr.bf16.mxu0 0
        %1095 = vmatpush1.bf16.msra.mxu0 0
        %1096 = vmatprep.subr.bf16.mxu0 0
        %1097 = vmatpush1.bf16.msra.mxu0 0
        %1098 = vmatprep.subr.bf16.mxu0 0
        %1099 = vmatpush1.bf16.msra.mxu0 0
        %1100 = vmatprep.subr.bf16.mxu0 0
        %1101 = vmatpush1.bf16.msra.mxu0 0
        %1102 = vmatprep.subr.bf16.mxu0 0
        %1103 = vmatpush1.bf16.msra.mxu0 %v1086
        %1104 = vmatprep.subr.bf16.mxu0 0
        %1105 = vmatpush2.bf16.msra.mxu0 0
        %1106 = vmatprep.subr.bf16.mxu0 0
        %1107 = vmatpush2.bf16.msra.mxu0 0
        %1108 = vmatprep.subr.bf16.mxu0 0
        %1109 = vmatpush2.bf16.msra.mxu0 0
        %1110 = vmatprep.subr.bf16.mxu0 0
        %1111 = vmatpush2.bf16.msra.mxu0 0
        %1112 = vmatprep.subr.bf16.mxu0 0
        %1113 = vmatpush2.bf16.msra.mxu0 0
        %1114 = vmatprep.subr.bf16.mxu0 0
        %1115 = vmatpush2.bf16.msra.mxu0 0
        %1116 = vmatprep.subr.bf16.mxu0 0
        %1117 = vmatpush2.bf16.msra.mxu0 0
        %1118 = vmatprep.subr.bf16.mxu0 0
        %1119 = vmatpush2.bf16.msra.mxu0 0
        %1120 = vmatprep.mubr.bf16.mxu0 0
        %1121 = vmatmul.mubr.bf16.gmra.mxu0 %v395
        %v1122 = vpop.f32.mrf.mxu0
        %v1123 = vadd.f32 0.0, %v1122
        %v1124 = vpop.f32.mrf.mxu0
        %v1125 = vpop.f32.mrf.mxu0
        %v1126 = vadd.f32 0.0, %v1125
        %v1127 = vpop.f32.mrf.mxu0
        %1128 = vmatprep.mubr.bf16.mxu0 0
        %1129 = vmatmul.mubr.bf16.gmra.mxu0 %v398
        %v1130 = vpop.f32.mrf.mxu0
        %v1131 = vadd.f32 0.0, %v1130
        %v1132 = vpop.f32.mrf.mxu0
        %v1133 = vpop.f32.mrf.mxu0
        %v1134 = vadd.f32 0.0, %v1133
        %v1135 = vpop.f32.mrf.mxu0
        %1136 = vdwg.mxu0
        %v1137 = vld [vmem:[#allocation2] sm:$0xff]
        %v1138 = vld [vmem:[#allocation2 + $0x8] sm:$0xff]
        %v1139 = vld [vmem:[#allocation2 + $0x10] sm:$0xff]
        %v1140 = vld [vmem:[#allocation2 + $0x18] sm:$0xff]
        %v1141 = vadd.f32 %v1137, %v1123
        %v1142 = vadd.f32 %v1138, %v1126
        %v1143 = vadd.f32 %v1139, %v1131
        %v1144 = vadd.f32 %v1140, %v1134
        %1145 = vst.msk [vmem:[#allocation2] sm:$0xff] %vm320, %v1141
        %1146 = vst.msk [vmem:[#allocation2 + $0x8] sm:$0xff] %vm320, %v1142
        %1147 = vst.msk [vmem:[#allocation2 + $0x10] sm:$0xff] %vm320, %v1143
        %1148 = vst.msk [vmem:[#allocation2 + $0x18] sm:$0xff] %vm320, %v1144
        %v1150 = vsel %vm327, %v223, 0
        %1152 = vmatprep.subr.bf16.mxu0 0
        %1153 = vmatpush1.bf16.msra.mxu0 0
        %1154 = vmatprep.subr.bf16.mxu0 0
        %1155 = vmatpush1.bf16.msra.mxu0 0
        %1156 = vmatprep.subr.bf16.mxu0 0
        %1157 = vmatpush1.bf16.msra.mxu0 0
        %1158 = vmatprep.subr.bf16.mxu0 0
        %1159 = vmatpush1.bf16.msra.mxu0 0
        %1160 = vmatprep.subr.bf16.mxu0 0
        %1161 = vmatpush1.bf16.msra.mxu0 0
        %1162 = vmatprep.subr.bf16.mxu0 0
        %1163 = vmatpush1.bf16.msra.mxu0 0
        %1164 = vmatprep.subr.bf16.mxu0 0
        %1165 = vmatpush1.bf16.msra.mxu0 0
        %1166 = vmatprep.subr.bf16.mxu0 0
        %1167 = vmatpush1.bf16.msra.mxu0 %v1150
        %1168 = vmatprep.subr.bf16.mxu0 0
        %1169 = vmatpush2.bf16.msra.mxu0 0
        %1170 = vmatprep.subr.bf16.mxu0 0
        %1171 = vmatpush2.bf16.msra.mxu0 0
        %1172 = vmatprep.subr.bf16.mxu0 0
        %1173 = vmatpush2.bf16.msra.mxu0 0
        %1174 = vmatprep.subr.bf16.mxu0 0
        %1175 = vmatpush2.bf16.msra.mxu0 0
        %1176 = vmatprep.subr.bf16.mxu0 0
        %1177 = vmatpush2.bf16.msra.mxu0 0
        %1178 = vmatprep.subr.bf16.mxu0 0
        %1179 = vmatpush2.bf16.msra.mxu0 0
        %1180 = vmatprep.subr.bf16.mxu0 0
        %1181 = vmatpush2.bf16.msra.mxu0 0
        %1182 = vmatprep.subr.bf16.mxu0 0
        %1183 = vmatpush2.bf16.msra.mxu0 0
        %1184 = vmatprep.mubr.bf16.mxu0 0
        %1185 = vmatmul.mubr.bf16.gmra.mxu0 %v468
        %v1186 = vpop.f32.mrf.mxu0
        %v1187 = vadd.f32 0.0, %v1186
        %v1188 = vpop.f32.mrf.mxu0
        %v1189 = vpop.f32.mrf.mxu0
        %v1190 = vadd.f32 0.0, %v1189
        %v1191 = vpop.f32.mrf.mxu0
        %1192 = vmatprep.mubr.bf16.mxu0 0
        %1193 = vmatmul.mubr.bf16.gmra.mxu0 %v471
        %v1194 = vpop.f32.mrf.mxu0
        %v1195 = vadd.f32 0.0, %v1194
        %v1196 = vpop.f32.mrf.mxu0
        %v1197 = vpop.f32.mrf.mxu0
        %v1198 = vadd.f32 0.0, %v1197
        %v1199 = vpop.f32.mrf.mxu0
        %1200 = vdwg.mxu0
        %v1201 = vld [vmem:[#allocation2] sm:$0xff]
        %v1202 = vld [vmem:[#allocation2 + $0x8] sm:$0xff]
        %v1203 = vld [vmem:[#allocation2 + $0x10] sm:$0xff]
        %v1204 = vld [vmem:[#allocation2 + $0x18] sm:$0xff]
        %v1205 = vadd.f32 %v1201, %v1187
        %v1206 = vadd.f32 %v1202, %v1190
        %v1207 = vadd.f32 %v1203, %v1195
        %v1208 = vadd.f32 %v1204, %v1198
        %1209 = vst.msk [vmem:[#allocation2] sm:$0xff] %vm320, %v1205
        %1210 = vst.msk [vmem:[#allocation2 + $0x8] sm:$0xff] %vm320, %v1206
        %1211 = vst.msk [vmem:[#allocation2 + $0x10] sm:$0xff] %vm320, %v1207
        %1212 = vst.msk [vmem:[#allocation2 + $0x18] sm:$0xff] %vm320, %v1208
        %v1214 = vsel %vm327, %v226, 0
        %1216 = vmatprep.subr.bf16.mxu0 0
        %1217 = vmatpush1.bf16.msra.mxu0 0
        %1218 = vmatprep.subr.bf16.mxu0 0
        %1219 = vmatpush1.bf16.msra.mxu0 0
        %1220 = vmatprep.subr.bf16.mxu0 0
        %1221 = vmatpush1.bf16.msra.mxu0 0
        %1222 = vmatprep.subr.bf16.mxu0 0
        %1223 = vmatpush1.bf16.msra.mxu0 0
        %1224 = vmatprep.subr.bf16.mxu0 0
        %1225 = vmatpush1.bf16.msra.mxu0 0
        %1226 = vmatprep.subr.bf16.mxu0 0
        %1227 = vmatpush1.bf16.msra.mxu0 0
        %1228 = vmatprep.subr.bf16.mxu0 0
        %1229 = vmatpush1.bf16.msra.mxu0 0
        %1230 = vmatprep.subr.bf16.mxu0 0
        %1231 = vmatpush1.bf16.msra.mxu0 %v1214
        %1232 = vmatprep.subr.bf16.mxu0 0
        %1233 = vmatpush2.bf16.msra.mxu0 0
        %1234 = vmatprep.subr.bf16.mxu0 0
        %1235 = vmatpush2.bf16.msra.mxu0 0
        %1236 = vmatprep.subr.bf16.mxu0 0
        %1237 = vmatpush2.bf16.msra.mxu0 0
        %1238 = vmatprep.subr.bf16.mxu0 0
        %1239 = vmatpush2.bf16.msra.mxu0 0
        %1240 = vmatprep.subr.bf16.mxu0 0
        %1241 = vmatpush2.bf16.msra.mxu0 0
        %1242 = vmatprep.subr.bf16.mxu0 0
        %1243 = vmatpush2.bf16.msra.mxu0 0
        %1244 = vmatprep.subr.bf16.mxu0 0
        %1245 = vmatpush2.bf16.msra.mxu0 0
        %1246 = vmatprep.subr.bf16.mxu0 0
        %1247 = vmatpush2.bf16.msra.mxu0 0
        %1248 = vmatprep.mubr.bf16.mxu0 0
        %1249 = vmatmul.mubr.bf16.gmra.mxu0 %v542
        %v1250 = vpop.f32.mrf.mxu0
        %v1251 = vadd.f32 0.0, %v1250
        %v1252 = vpop.f32.mrf.mxu0
        %v1253 = vpop.f32.mrf.mxu0
        %v1254 = vadd.f32 0.0, %v1253
        %v1255 = vpop.f32.mrf.mxu0
        %1256 = vmatprep.mubr.bf16.mxu0 0
        %1257 = vmatmul.mubr.bf16.gmra.mxu0 %v545
        %v1258 = vpop.f32.mrf.mxu0
        %v1259 = vadd.f32 0.0, %v1258
        %v1260 = vpop.f32.mrf.mxu0
        %v1261 = vpop.f32.mrf.mxu0
        %v1262 = vadd.f32 0.0, %v1261
        %v1263 = vpop.f32.mrf.mxu0
        %1264 = vdwg.mxu0
        %v1265 = vld [vmem:[#allocation2] sm:$0xff]
        %v1266 = vld [vmem:[#allocation2 + $0x8] sm:$0xff]
        %v1267 = vld [vmem:[#allocation2 + $0x10] sm:$0xff]
        %v1268 = vld [vmem:[#allocation2 + $0x18] sm:$0xff]
        %v1269 = vadd.f32 %v1265, %v1251
        %v1270 = vadd.f32 %v1266, %v1254
        %v1271 = vadd.f32 %v1267, %v1259
        %v1272 = vadd.f32 %v1268, %v1262
        %1273 = vst.msk [vmem:[#allocation2] sm:$0xff] %vm320, %v1269
        %1274 = vst.msk [vmem:[#allocation2 + $0x8] sm:$0xff] %vm320, %v1270
        %1275 = vst.msk [vmem:[#allocation2 + $0x10] sm:$0xff] %vm320, %v1271
        %1276 = vst.msk [vmem:[#allocation2 + $0x18] sm:$0xff] %vm320, %v1272
        %v1277 = vld [vmem:[#allocation2] sm:$0xff]
        %v1278 = vld [vmem:[#allocation2 + $0x8] sm:$0xff]
        %v1279 = vld [vmem:[#allocation2 + $0x10] sm:$0xff]
        %v1280 = vld [vmem:[#allocation2 + $0x18] sm:$0xff]
        %v1281 = vmul.f32 %v1277, -0.5
        %v1282 = vmul.f32 %v1278, -0.5
        %v1283 = vmul.f32 %v1279, -0.5
        %v1284 = vmul.f32 %v1280, -0.5
        %v1285 = vmax.f32 %v1277, %v1281
        %v1286 = vmax.f32 %v1278, %v1282
        %v1287 = vmax.f32 %v1279, %v1283
        %v1288 = vmax.f32 %v1280, %v1284
        %s1289 = scalar_lea.vmem %s182, 96 [#allocation3]
        %1290 = vst.msk [vmem:[%s1289] sm:$0xff] %vm320, %v1285
        %1291 = vst.msk [vmem:[%s1289 + $0x8] sm:$0xff] %vm320, %v1286
        %1292 = vst.msk [vmem:[%s1289 + $0x10] sm:$0xff] %vm320, %v1287
        %1293 = vst.msk [vmem:[%s1289 + $0x18] sm:$0xff] %vm320, %v1288
        %v1295 = vsel %vm327, %v209, 0
        %1297 = vmatprep.subr.bf16.mxu0 0
        %1298 = vmatpush1.bf16.msra.mxu0 0
        %1299 = vmatprep.subr.bf16.mxu0 0
        %1300 = vmatpush1.bf16.msra.mxu0 0
        %1301 = vmatprep.subr.bf16.mxu0 0
        %1302 = vmatpush1.bf16.msra.mxu0 0
        %1303 = vmatprep.subr.bf16.mxu0 0
        %1304 = vmatpush1.bf16.msra.mxu0 0
        %1305 = vmatprep.subr.bf16.mxu0 0
        %1306 = vmatpush1.bf16.msra.mxu0 0
        %1307 = vmatprep.subr.bf16.mxu0 0
        %1308 = vmatpush1.bf16.msra.mxu0 0
        %1309 = vmatprep.subr.bf16.mxu0 0
        %1310 = vmatpush1.bf16.msra.mxu0 0
        %1311 = vmatprep.subr.bf16.mxu0 0
        %1312 = vmatpush1.bf16.msra.mxu0 %v1295
        %1313 = vmatprep.subr.bf16.mxu0 0
        %1314 = vmatpush2.bf16.msra.mxu0 0
        %1315 = vmatprep.subr.bf16.mxu0 0
        %1316 = vmatpush2.bf16.msra.mxu0 0
        %1317 = vmatprep.subr.bf16.mxu0 0
        %1318 = vmatpush2.bf16.msra.mxu0 0
        %1319 = vmatprep.subr.bf16.mxu0 0
        %1320 = vmatpush2.bf16.msra.mxu0 0
        %1321 = vmatprep.subr.bf16.mxu0 0
        %1322 = vmatpush2.bf16.msra.mxu0 0
        %1323 = vmatprep.subr.bf16.mxu0 0
        %1324 = vmatpush2.bf16.msra.mxu0 0
        %1325 = vmatprep.subr.bf16.mxu0 0
        %1326 = vmatpush2.bf16.msra.mxu0 0
        %1327 = vmatprep.subr.bf16.mxu0 0
        %1328 = vmatpush2.bf16.msra.mxu0 0
        %1329 = vmatprep.mubr.bf16.mxu0 0
        %1330 = vmatmul.mubr.bf16.gmra.mxu0 %v322
        %v1331 = vpop.f32.mrf.mxu0
        %v1332 = vadd.f32 0.0, %v1331
        %v1333 = vpop.f32.mrf.mxu0
        %v1334 = vpop.f32.mrf.mxu0
        %v1335 = vadd.f32 0.0, %v1334
        %v1336 = vpop.f32.mrf.mxu0
        %1337 = vmatprep.mubr.bf16.mxu0 0
        %1338 = vmatmul.mubr.bf16.gmra.mxu0 %v325
        %v1339 = vpop.f32.mrf.mxu0
        %v1340 = vadd.f32 0.0, %v1339
        %v1341 = vpop.f32.mrf.mxu0
        %v1342 = vpop.f32.mrf.mxu0
        %v1343 = vadd.f32 0.0, %v1342
        %v1344 = vpop.f32.mrf.mxu0
        %1345 = vdwg.mxu0
        %1346 = vst.msk [vmem:[#allocation2] sm:$0xff] %vm320, %v1332
        %1347 = vst.msk [vmem:[#allocation2 + $0x8] sm:$0xff] %vm320, %v1335
        %1348 = vst.msk [vmem:[#allocation2 + $0x10] sm:$0xff] %vm320, %v1340
        %1349 = vst.msk [vmem:[#allocation2 + $0x18] sm:$0xff] %vm320, %v1343
        %v1351 = vsel %vm327, %v212, 0
        %1353 = vmatprep.subr.bf16.mxu0 0
        %1354 = vmatpush1.bf16.msra.mxu0 0
        %1355 = vmatprep.subr.bf16.mxu0 0
        %1356 = vmatpush1.bf16.msra.mxu0 0
        %1357 = vmatprep.subr.bf16.mxu0 0
        %1358 = vmatpush1.bf16.msra.mxu0 0
        %1359 = vmatprep.subr.bf16.mxu0 0
        %1360 = vmatpush1.bf16.msra.mxu0 0
        %1361 = vmatprep.subr.bf16.mxu0 0
        %1362 = vmatpush1.bf16.msra.mxu0 0
        %1363 = vmatprep.subr.bf16.mxu0 0
        %1364 = vmatpush1.bf16.msra.mxu0 0
        %1365 = vmatprep.subr.bf16.mxu0 0
        %1366 = vmatpush1.bf16.msra.mxu0 0
        %1367 = vmatprep.subr.bf16.mxu0 0
        %1368 = vmatpush1.bf16.msra.mxu0 %v1351
        %1369 = vmatprep.subr.bf16.mxu0 0
        %1370 = vmatpush2.bf16.msra.mxu0 0
        %1371 = vmatprep.subr.bf16.mxu0 0
        %1372 = vmatpush2.bf16.msra.mxu0 0
        %1373 = vmatprep.subr.bf16.mxu0 0
        %1374 = vmatpush2.bf16.msra.mxu0 0
        %1375 = vmatprep.subr.bf16.mxu0 0
        %1376 = vmatpush2.bf16.msra.mxu0 0
        %1377 = vmatprep.subr.bf16.mxu0 0
        %1378 = vmatpush2.bf16.msra.mxu0 0
        %1379 = vmatprep.subr.bf16.mxu0 0
        %1380 = vmatpush2.bf16.msra.mxu0 0
        %1381 = vmatprep.subr.bf16.mxu0 0
        %1382 = vmatpush2.bf16.msra.mxu0 0
        %1383 = vmatprep.subr.bf16.mxu0 0
        %1384 = vmatpush2.bf16.msra.mxu0 0
        %1385 = vmatprep.mubr.bf16.mxu0 0
        %1386 = vmatmul.mubr.bf16.gmra.mxu0 %v395
        %v1387 = vpop.f32.mrf.mxu0
        %v1388 = vadd.f32 0.0, %v1387
        %v1389 = vpop.f32.mrf.mxu0
        %v1390 = vpop.f32.mrf.mxu0
        %v1391 = vadd.f32 0.0, %v1390
        %v1392 = vpop.f32.mrf.mxu0
        %1393 = vmatprep.mubr.bf16.mxu0 0
        %1394 = vmatmul.mubr.bf16.gmra.mxu0 %v398
        %v1395 = vpop.f32.mrf.mxu0
        %v1396 = vadd.f32 0.0, %v1395
        %v1397 = vpop.f32.mrf.mxu0
        %v1398 = vpop.f32.mrf.mxu0
        %v1399 = vadd.f32 0.0, %v1398
        %v1400 = vpop.f32.mrf.mxu0
        %1401 = vdwg.mxu0
        %v1402 = vld [vmem:[#allocation2] sm:$0xff]
        %v1403 = vld [vmem:[#allocation2 + $0x8] sm:$0xff]
        %v1404 = vld [vmem:[#allocation2 + $0x10] sm:$0xff]
        %v1405 = vld [vmem:[#allocation2 + $0x18] sm:$0xff]
        %v1406 = vadd.f32 %v1402, %v1388
        %v1407 = vadd.f32 %v1403, %v1391
        %v1408 = vadd.f32 %v1404, %v1396
        %v1409 = vadd.f32 %v1405, %v1399
        %1410 = vst.msk [vmem:[#allocation2] sm:$0xff] %vm320, %v1406
        %1411 = vst.msk [vmem:[#allocation2 + $0x8] sm:$0xff] %vm320, %v1407
        %1412 = vst.msk [vmem:[#allocation2 + $0x10] sm:$0xff] %vm320, %v1408
        %1413 = vst.msk [vmem:[#allocation2 + $0x18] sm:$0xff] %vm320, %v1409
        %v1415 = vsel %vm327, %v224, 0
        %1417 = vmatprep.subr.bf16.mxu0 0
        %1418 = vmatpush1.bf16.msra.mxu0 0
        %1419 = vmatprep.subr.bf16.mxu0 0
        %1420 = vmatpush1.bf16.msra.mxu0 0
        %1421 = vmatprep.subr.bf16.mxu0 0
        %1422 = vmatpush1.bf16.msra.mxu0 0
        %1423 = vmatprep.subr.bf16.mxu0 0
        %1424 = vmatpush1.bf16.msra.mxu0 0
        %1425 = vmatprep.subr.bf16.mxu0 0
        %1426 = vmatpush1.bf16.msra.mxu0 0
        %1427 = vmatprep.subr.bf16.mxu0 0
        %1428 = vmatpush1.bf16.msra.mxu0 0
        %1429 = vmatprep.subr.bf16.mxu0 0
        %1430 = vmatpush1.bf16.msra.mxu0 0
        %1431 = vmatprep.subr.bf16.mxu0 0
        %1432 = vmatpush1.bf16.msra.mxu0 %v1415
        %1433 = vmatprep.subr.bf16.mxu0 0
        %1434 = vmatpush2.bf16.msra.mxu0 0
        %1435 = vmatprep.subr.bf16.mxu0 0
        %1436 = vmatpush2.bf16.msra.mxu0 0
        %1437 = vmatprep.subr.bf16.mxu0 0
        %1438 = vmatpush2.bf16.msra.mxu0 0
        %1439 = vmatprep.subr.bf16.mxu0 0
        %1440 = vmatpush2.bf16.msra.mxu0 0
        %1441 = vmatprep.subr.bf16.mxu0 0
        %1442 = vmatpush2.bf16.msra.mxu0 0
        %1443 = vmatprep.subr.bf16.mxu0 0
        %1444 = vmatpush2.bf16.msra.mxu0 0
        %1445 = vmatprep.subr.bf16.mxu0 0
        %1446 = vmatpush2.bf16.msra.mxu0 0
        %1447 = vmatprep.subr.bf16.mxu0 0
        %1448 = vmatpush2.bf16.msra.mxu0 0
        %1449 = vmatprep.mubr.bf16.mxu0 0
        %1450 = vmatmul.mubr.bf16.gmra.mxu0 %v468
        %v1451 = vpop.f32.mrf.mxu0
        %v1452 = vadd.f32 0.0, %v1451
        %v1453 = vpop.f32.mrf.mxu0
        %v1454 = vpop.f32.mrf.mxu0
        %v1455 = vadd.f32 0.0, %v1454
        %v1456 = vpop.f32.mrf.mxu0
        %1457 = vmatprep.mubr.bf16.mxu0 0
        %1458 = vmatmul.mubr.bf16.gmra.mxu0 %v471
        %v1459 = vpop.f32.mrf.mxu0
        %v1460 = vadd.f32 0.0, %v1459
        %v1461 = vpop.f32.mrf.mxu0
        %v1462 = vpop.f32.mrf.mxu0
        %v1463 = vadd.f32 0.0, %v1462
        %v1464 = vpop.f32.mrf.mxu0
        %1465 = vdwg.mxu0
        %v1466 = vld [vmem:[#allocation2] sm:$0xff]
        %v1467 = vld [vmem:[#allocation2 + $0x8] sm:$0xff]
        %v1468 = vld [vmem:[#allocation2 + $0x10] sm:$0xff]
        %v1469 = vld [vmem:[#allocation2 + $0x18] sm:$0xff]
        %v1470 = vadd.f32 %v1466, %v1452
        %v1471 = vadd.f32 %v1467, %v1455
        %v1472 = vadd.f32 %v1468, %v1460
        %v1473 = vadd.f32 %v1469, %v1463
        %1474 = vst.msk [vmem:[#allocation2] sm:$0xff] %vm320, %v1470
        %1475 = vst.msk [vmem:[#allocation2 + $0x8] sm:$0xff] %vm320, %v1471
        %1476 = vst.msk [vmem:[#allocation2 + $0x10] sm:$0xff] %vm320, %v1472
        %1477 = vst.msk [vmem:[#allocation2 + $0x18] sm:$0xff] %vm320, %v1473
        %v1479 = vsel %vm327, %v227, 0
        %1481 = vmatprep.subr.bf16.mxu0 0
        %1482 = vmatpush1.bf16.msra.mxu0 0
        %1483 = vmatprep.subr.bf16.mxu0 0
        %1484 = vmatpush1.bf16.msra.mxu0 0
        %1485 = vmatprep.subr.bf16.mxu0 0
        %1486 = vmatpush1.bf16.msra.mxu0 0
        %1487 = vmatprep.subr.bf16.mxu0 0
        %1488 = vmatpush1.bf16.msra.mxu0 0
        %1489 = vmatprep.subr.bf16.mxu0 0
        %1490 = vmatpush1.bf16.msra.mxu0 0
        %1491 = vmatprep.subr.bf16.mxu0 0
        %1492 = vmatpush1.bf16.msra.mxu0 0
        %1493 = vmatprep.subr.bf16.mxu0 0
        %1494 = vmatpush1.bf16.msra.mxu0 0
        %1495 = vmatprep.subr.bf16.mxu0 0
        %1496 = vmatpush1.bf16.msra.mxu0 %v1479
        %1497 = vmatprep.subr.bf16.mxu0 0
        %1498 = vmatpush2.bf16.msra.mxu0 0
        %1499 = vmatprep.subr.bf16.mxu0 0
        %1500 = vmatpush2.bf16.msra.mxu0 0
        %1501 = vmatprep.subr.bf16.mxu0 0
        %1502 = vmatpush2.bf16.msra.mxu0 0
        %1503 = vmatprep.subr.bf16.mxu0 0
        %1504 = vmatpush2.bf16.msra.mxu0 0
        %1505 = vmatprep.subr.bf16.mxu0 0
        %1506 = vmatpush2.bf16.msra.mxu0 0
        %1507 = vmatprep.subr.bf16.mxu0 0
        %1508 = vmatpush2.bf16.msra.mxu0 0
        %1509 = vmatprep.subr.bf16.mxu0 0
        %1510 = vmatpush2.bf16.msra.mxu0 0
        %1511 = vmatprep.subr.bf16.mxu0 0
        %1512 = vmatpush2.bf16.msra.mxu0 0
        %1513 = vmatprep.mubr.bf16.mxu0 0
        %1514 = vmatmul.mubr.bf16.gmra.mxu0 %v542
        %v1515 = vpop.f32.mrf.mxu0
        %v1516 = vadd.f32 0.0, %v1515
        %v1517 = vpop.f32.mrf.mxu0
        %v1518 = vpop.f32.mrf.mxu0
        %v1519 = vadd.f32 0.0, %v1518
        %v1520 = vpop.f32.mrf.mxu0
        %1521 = vmatprep.mubr.bf16.mxu0 0
        %1522 = vmatmul.mubr.bf16.gmra.mxu0 %v545
        %v1523 = vpop.f32.mrf.mxu0
        %v1524 = vadd.f32 0.0, %v1523
        %v1525 = vpop.f32.mrf.mxu0
        %v1526 = vpop.f32.mrf.mxu0
        %v1527 = vadd.f32 0.0, %v1526
        %v1528 = vpop.f32.mrf.mxu0
        %1529 = vdwg.mxu0
        %v1530 = vld [vmem:[#allocation2] sm:$0xff]
        %v1531 = vld [vmem:[#allocation2 + $0x8] sm:$0xff]
        %v1532 = vld [vmem:[#allocation2 + $0x10] sm:$0xff]
        %v1533 = vld [vmem:[#allocation2 + $0x18] sm:$0xff]
        %v1534 = vadd.f32 %v1530, %v1516
        %v1535 = vadd.f32 %v1531, %v1519
        %v1536 = vadd.f32 %v1532, %v1524
        %v1537 = vadd.f32 %v1533, %v1527
        %1538 = vst.msk [vmem:[#allocation2] sm:$0xff] %vm320, %v1534
        %1539 = vst.msk [vmem:[#allocation2 + $0x8] sm:$0xff] %vm320, %v1535
        %1540 = vst.msk [vmem:[#allocation2 + $0x10] sm:$0xff] %vm320, %v1536
        %1541 = vst.msk [vmem:[#allocation2 + $0x18] sm:$0xff] %vm320, %v1537
        %v1542 = vld [vmem:[#allocation2] sm:$0xff]
        %v1543 = vld [vmem:[#allocation2 + $0x8] sm:$0xff]
        %v1544 = vld [vmem:[#allocation2 + $0x10] sm:$0xff]
        %v1545 = vld [vmem:[#allocation2 + $0x18] sm:$0xff]
        %v1546 = vmul.f32 %v1542, -0.5
        %v1547 = vmul.f32 %v1543, -0.5
        %v1548 = vmul.f32 %v1544, -0.5
        %v1549 = vmul.f32 %v1545, -0.5
        %v1550 = vmax.f32 %v1542, %v1546
        %v1551 = vmax.f32 %v1543, %v1547
        %v1552 = vmax.f32 %v1544, %v1548
        %v1553 = vmax.f32 %v1545, %v1549
        %s1554 = scalar_lea.vmem %s182, 128 [#allocation3]
        %1555 = vst.msk [vmem:[%s1554] sm:$0xff] %vm320, %v1550
        %1556 = vst.msk [vmem:[%s1554 + $0x8] sm:$0xff] %vm320, %v1551
        %1557 = vst.msk [vmem:[%s1554 + $0x10] sm:$0xff] %vm320, %v1552
        %1558 = vst.msk [vmem:[%s1554 + $0x18] sm:$0xff] %vm320, %v1553
        %v1560 = vsel %vm327, %v210, 0
        %1562 = vmatprep.subr.bf16.mxu0 0
        %1563 = vmatpush1.bf16.msra.mxu0 0
        %1564 = vmatprep.subr.bf16.mxu0 0
        %1565 = vmatpush1.bf16.msra.mxu0 0
        %1566 = vmatprep.subr.bf16.mxu0 0
        %1567 = vmatpush1.bf16.msra.mxu0 0
        %1568 = vmatprep.subr.bf16.mxu0 0
        %1569 = vmatpush1.bf16.msra.mxu0 0
        %1570 = vmatprep.subr.bf16.mxu0 0
        %1571 = vmatpush1.bf16.msra.mxu0 0
        %1572 = vmatprep.subr.bf16.mxu0 0
        %1573 = vmatpush1.bf16.msra.mxu0 0
        %1574 = vmatprep.subr.bf16.mxu0 0
        %1575 = vmatpush1.bf16.msra.mxu0 0
        %1576 = vmatprep.subr.bf16.mxu0 0
        %1577 = vmatpush1.bf16.msra.mxu0 %v1560
        %1578 = vmatprep.subr.bf16.mxu0 0
        %1579 = vmatpush2.bf16.msra.mxu0 0
        %1580 = vmatprep.subr.bf16.mxu0 0
        %1581 = vmatpush2.bf16.msra.mxu0 0
        %1582 = vmatprep.subr.bf16.mxu0 0
        %1583 = vmatpush2.bf16.msra.mxu0 0
        %1584 = vmatprep.subr.bf16.mxu0 0
        %1585 = vmatpush2.bf16.msra.mxu0 0
        %1586 = vmatprep.subr.bf16.mxu0 0
        %1587 = vmatpush2.bf16.msra.mxu0 0
        %1588 = vmatprep.subr.bf16.mxu0 0
        %1589 = vmatpush2.bf16.msra.mxu0 0
        %1590 = vmatprep.subr.bf16.mxu0 0
        %1591 = vmatpush2.bf16.msra.mxu0 0
        %1592 = vmatprep.subr.bf16.mxu0 0
        %1593 = vmatpush2.bf16.msra.mxu0 0
        %1594 = vmatprep.mubr.bf16.mxu0 0
        %1595 = vmatmul.mubr.bf16.gmra.mxu0 %v322
        %v1596 = vpop.f32.mrf.mxu0
        %v1597 = vadd.f32 0.0, %v1596
        %v1598 = vpop.f32.mrf.mxu0
        %v1599 = vpop.f32.mrf.mxu0
        %v1600 = vadd.f32 0.0, %v1599
        %v1601 = vpop.f32.mrf.mxu0
        %1602 = vmatprep.mubr.bf16.mxu0 0
        %1603 = vmatmul.mubr.bf16.gmra.mxu0 %v325
        %v1604 = vpop.f32.mrf.mxu0
        %v1605 = vadd.f32 0.0, %v1604
        %v1606 = vpop.f32.mrf.mxu0
        %v1607 = vpop.f32.mrf.mxu0
        %v1608 = vadd.f32 0.0, %v1607
        %v1609 = vpop.f32.mrf.mxu0
        %1610 = vdwg.mxu0
        %1611 = vst.msk [vmem:[#allocation2] sm:$0xff] %vm320, %v1597
        %1612 = vst.msk [vmem:[#allocation2 + $0x8] sm:$0xff] %vm320, %v1600
        %1613 = vst.msk [vmem:[#allocation2 + $0x10] sm:$0xff] %vm320, %v1605
        %1614 = vst.msk [vmem:[#allocation2 + $0x18] sm:$0xff] %vm320, %v1608
        %v1616 = vsel %vm327, %v225, 0
        %1618 = vmatprep.subr.bf16.mxu0 0
        %1619 = vmatpush1.bf16.msra.mxu0 0
        %1620 = vmatprep.subr.bf16.mxu0 0
        %1621 = vmatpush1.bf16.msra.mxu0 0
        %1622 = vmatprep.subr.bf16.mxu0 0
        %1623 = vmatpush1.bf16.msra.mxu0 0
        %1624 = vmatprep.subr.bf16.mxu0 0
        %1625 = vmatpush1.bf16.msra.mxu0 0
        %1626 = vmatprep.subr.bf16.mxu0 0
        %1627 = vmatpush1.bf16.msra.mxu0 0
        %1628 = vmatprep.subr.bf16.mxu0 0
        %1629 = vmatpush1.bf16.msra.mxu0 0
        %1630 = vmatprep.subr.bf16.mxu0 0
        %1631 = vmatpush1.bf16.msra.mxu0 0
        %1632 = vmatprep.subr.bf16.mxu0 0
        %1633 = vmatpush1.bf16.msra.mxu0 %v1616
        %1634 = vmatprep.subr.bf16.mxu0 0
        %1635 = vmatpush2.bf16.msra.mxu0 0
        %1636 = vmatprep.subr.bf16.mxu0 0
        %1637 = vmatpush2.bf16.msra.mxu0 0
        %1638 = vmatprep.subr.bf16.mxu0 0
        %1639 = vmatpush2.bf16.msra.mxu0 0
        %1640 = vmatprep.subr.bf16.mxu0 0
        %1641 = vmatpush2.bf16.msra.mxu0 0
        %1642 = vmatprep.subr.bf16.mxu0 0
        %1643 = vmatpush2.bf16.msra.mxu0 0
        %1644 = vmatprep.subr.bf16.mxu0 0
        %1645 = vmatpush2.bf16.msra.mxu0 0
        %1646 = vmatprep.subr.bf16.mxu0 0
        %1647 = vmatpush2.bf16.msra.mxu0 0
        %1648 = vmatprep.subr.bf16.mxu0 0
        %1649 = vmatpush2.bf16.msra.mxu0 0
        %1650 = vmatprep.mubr.bf16.mxu0 0
        %1651 = vmatmul.mubr.bf16.gmra.mxu0 %v468
        %v1652 = vpop.f32.mrf.mxu0
        %v1653 = vadd.f32 0.0, %v1652
        %v1654 = vpop.f32.mrf.mxu0
        %v1655 = vpop.f32.mrf.mxu0
        %v1656 = vadd.f32 0.0, %v1655
        %v1657 = vpop.f32.mrf.mxu0
        %1658 = vmatprep.mubr.bf16.mxu0 0
        %1659 = vmatmul.mubr.bf16.gmra.mxu0 %v471
        %v1660 = vpop.f32.mrf.mxu0
        %v1661 = vadd.f32 0.0, %v1660
        %v1662 = vpop.f32.mrf.mxu0
        %v1663 = vpop.f32.mrf.mxu0
        %v1664 = vadd.f32 0.0, %v1663
        %v1665 = vpop.f32.mrf.mxu0
        %1666 = vdwg.mxu0
        %v1667 = vld [vmem:[#allocation2] sm:$0xff]
        %v1668 = vld [vmem:[#allocation2 + $0x8] sm:$0xff]
        %v1669 = vld [vmem:[#allocation2 + $0x10] sm:$0xff]
        %v1670 = vld [vmem:[#allocation2 + $0x18] sm:$0xff]
        %v1671 = vadd.f32 %v1667, %v1653
        %v1672 = vadd.f32 %v1668, %v1656
        %v1673 = vadd.f32 %v1669, %v1661
        %v1674 = vadd.f32 %v1670, %v1664
        %1675 = vst.msk [vmem:[#allocation2] sm:$0xff] %vm320, %v1671
        %1676 = vst.msk [vmem:[#allocation2 + $0x8] sm:$0xff] %vm320, %v1672
        %1677 = vst.msk [vmem:[#allocation2 + $0x10] sm:$0xff] %vm320, %v1673
        %1678 = vst.msk [vmem:[#allocation2 + $0x18] sm:$0xff] %vm320, %v1674
        %v1679 = vld [vmem:[#allocation2] sm:$0xff]
        %v1680 = vld [vmem:[#allocation2 + $0x8] sm:$0xff]
        %v1681 = vld [vmem:[#allocation2 + $0x10] sm:$0xff]
        %v1682 = vld [vmem:[#allocation2 + $0x18] sm:$0xff]
        %v1683 = vmul.f32 %v1679, -0.5
        %v1684 = vmul.f32 %v1680, -0.5
        %v1685 = vmul.f32 %v1681, -0.5
        %v1686 = vmul.f32 %v1682, -0.5
        %v1687 = vmax.f32 %v1679, %v1683
        %v1688 = vmax.f32 %v1680, %v1684
        %v1689 = vmax.f32 %v1681, %v1685
        %v1690 = vmax.f32 %v1682, %v1686
        %s1691 = scalar_lea.vmem %s182, 160 [#allocation3]
        %1692 = vst.msk [vmem:[%s1691] sm:$0xff] %vm320, %v1687
        %1693 = vst.msk [vmem:[%s1691 + $0x8] sm:$0xff] %vm320, %v1688
        %1694 = vst.msk [vmem:[%s1691 + $0x10] sm:$0xff] %vm320, %v1689
        %1695 = vst.msk [vmem:[%s1691 + $0x18] sm:$0xff] %vm320, %v1690
        %v1697 = vsel %vm327, %v213, 0
        %1699 = vmatprep.subr.bf16.mxu0 0
        %1700 = vmatpush1.bf16.msra.mxu0 0
        %1701 = vmatprep.subr.bf16.mxu0 0
        %1702 = vmatpush1.bf16.msra.mxu0 0
        %1703 = vmatprep.subr.bf16.mxu0 0
        %1704 = vmatpush1.bf16.msra.mxu0 0
        %1705 = vmatprep.subr.bf16.mxu0 0
        %1706 = vmatpush1.bf16.msra.mxu0 0
        %1707 = vmatprep.subr.bf16.mxu0 0
        %1708 = vmatpush1.bf16.msra.mxu0 0
        %1709 = vmatprep.subr.bf16.mxu0 0
        %1710 = vmatpush1.bf16.msra.mxu0 0
        %1711 = vmatprep.subr.bf16.mxu0 0
        %1712 = vmatpush1.bf16.msra.mxu0 0
        %1713 = vmatprep.subr.bf16.mxu0 0
        %1714 = vmatpush1.bf16.msra.mxu0 %v1697
        %1715 = vmatprep.subr.bf16.mxu0 0
        %1716 = vmatpush2.bf16.msra.mxu0 0
        %1717 = vmatprep.subr.bf16.mxu0 0
        %1718 = vmatpush2.bf16.msra.mxu0 0
        %1719 = vmatprep.subr.bf16.mxu0 0
        %1720 = vmatpush2.bf16.msra.mxu0 0
        %1721 = vmatprep.subr.bf16.mxu0 0
        %1722 = vmatpush2.bf16.msra.mxu0 0
        %1723 = vmatprep.subr.bf16.mxu0 0
        %1724 = vmatpush2.bf16.msra.mxu0 0
        %1725 = vmatprep.subr.bf16.mxu0 0
        %1726 = vmatpush2.bf16.msra.mxu0 0
        %1727 = vmatprep.subr.bf16.mxu0 0
        %1728 = vmatpush2.bf16.msra.mxu0 0
        %1729 = vmatprep.subr.bf16.mxu0 0
        %1730 = vmatpush2.bf16.msra.mxu0 0
        %1731 = vmatprep.mubr.bf16.mxu0 0
        %1732 = vmatmul.mubr.bf16.gmra.mxu0 %v322
        %v1733 = vpop.f32.mrf.mxu0
        %v1734 = vadd.f32 0.0, %v1733
        %v1735 = vpop.f32.mrf.mxu0
        %v1736 = vpop.f32.mrf.mxu0
        %v1737 = vadd.f32 0.0, %v1736
        %v1738 = vpop.f32.mrf.mxu0
        %1739 = vmatprep.mubr.bf16.mxu0 0
        %1740 = vmatmul.mubr.bf16.gmra.mxu0 %v325
        %v1741 = vpop.f32.mrf.mxu0
        %v1742 = vadd.f32 0.0, %v1741
        %v1743 = vpop.f32.mrf.mxu0
        %v1744 = vpop.f32.mrf.mxu0
        %v1745 = vadd.f32 0.0, %v1744
        %v1746 = vpop.f32.mrf.mxu0
        %1747 = vdwg.mxu0
        %1748 = vst.msk [vmem:[#allocation2] sm:$0xff] %vm320, %v1734
        %1749 = vst.msk [vmem:[#allocation2 + $0x8] sm:$0xff] %vm320, %v1737
        %1750 = vst.msk [vmem:[#allocation2 + $0x10] sm:$0xff] %vm320, %v1742
        %1751 = vst.msk [vmem:[#allocation2 + $0x18] sm:$0xff] %vm320, %v1745
        %v1753 = vsel %vm327, %v216, 0
        %1755 = vmatprep.subr.bf16.mxu0 0
        %1756 = vmatpush1.bf16.msra.mxu0 0
        %1757 = vmatprep.subr.bf16.mxu0 0
        %1758 = vmatpush1.bf16.msra.mxu0 0
        %1759 = vmatprep.subr.bf16.mxu0 0
        %1760 = vmatpush1.bf16.msra.mxu0 0
        %1761 = vmatprep.subr.bf16.mxu0 0
        %1762 = vmatpush1.bf16.msra.mxu0 0
        %1763 = vmatprep.subr.bf16.mxu0 0
        %1764 = vmatpush1.bf16.msra.mxu0 0
        %1765 = vmatprep.subr.bf16.mxu0 0
        %1766 = vmatpush1.bf16.msra.mxu0 0
        %1767 = vmatprep.subr.bf16.mxu0 0
        %1768 = vmatpush1.bf16.msra.mxu0 0
        %1769 = vmatprep.subr.bf16.mxu0 0
        %1770 = vmatpush1.bf16.msra.mxu0 %v1753
        %1771 = vmatprep.subr.bf16.mxu0 0
        %1772 = vmatpush2.bf16.msra.mxu0 0
        %1773 = vmatprep.subr.bf16.mxu0 0
        %1774 = vmatpush2.bf16.msra.mxu0 0
        %1775 = vmatprep.subr.bf16.mxu0 0
        %1776 = vmatpush2.bf16.msra.mxu0 0
        %1777 = vmatprep.subr.bf16.mxu0 0
        %1778 = vmatpush2.bf16.msra.mxu0 0
        %1779 = vmatprep.subr.bf16.mxu0 0
        %1780 = vmatpush2.bf16.msra.mxu0 0
        %1781 = vmatprep.subr.bf16.mxu0 0
        %1782 = vmatpush2.bf16.msra.mxu0 0
        %1783 = vmatprep.subr.bf16.mxu0 0
        %1784 = vmatpush2.bf16.msra.mxu0 0
        %1785 = vmatprep.subr.bf16.mxu0 0
        %1786 = vmatpush2.bf16.msra.mxu0 0
        %1787 = vmatprep.mubr.bf16.mxu0 0
        %1788 = vmatmul.mubr.bf16.gmra.mxu0 %v395
        %v1789 = vpop.f32.mrf.mxu0
        %v1790 = vadd.f32 0.0, %v1789
        %v1791 = vpop.f32.mrf.mxu0
        %v1792 = vpop.f32.mrf.mxu0
        %v1793 = vadd.f32 0.0, %v1792
        %v1794 = vpop.f32.mrf.mxu0
        %1795 = vmatprep.mubr.bf16.mxu0 0
        %1796 = vmatmul.mubr.bf16.gmra.mxu0 %v398
        %v1797 = vpop.f32.mrf.mxu0
        %v1798 = vadd.f32 0.0, %v1797
        %v1799 = vpop.f32.mrf.mxu0
        %v1800 = vpop.f32.mrf.mxu0
        %v1801 = vadd.f32 0.0, %v1800
        %v1802 = vpop.f32.mrf.mxu0
        %1803 = vdwg.mxu0
        %v1804 = vld [vmem:[#allocation2] sm:$0xff]
        %v1805 = vld [vmem:[#allocation2 + $0x8] sm:$0xff]
        %v1806 = vld [vmem:[#allocation2 + $0x10] sm:$0xff]
        %v1807 = vld [vmem:[#allocation2 + $0x18] sm:$0xff]
        %v1808 = vadd.f32 %v1804, %v1790
        %v1809 = vadd.f32 %v1805, %v1793
        %v1810 = vadd.f32 %v1806, %v1798
        %v1811 = vadd.f32 %v1807, %v1801
        %1812 = vst.msk [vmem:[#allocation2] sm:$0xff] %vm320, %v1808
        %1813 = vst.msk [vmem:[#allocation2 + $0x8] sm:$0xff] %vm320, %v1809
        %1814 = vst.msk [vmem:[#allocation2 + $0x10] sm:$0xff] %vm320, %v1810
        %1815 = vst.msk [vmem:[#allocation2 + $0x18] sm:$0xff] %vm320, %v1811
        %v1816 = vld [vmem:[#allocation2] sm:$0xff]
        %v1817 = vld [vmem:[#allocation2 + $0x8] sm:$0xff]
        %v1818 = vld [vmem:[#allocation2 + $0x10] sm:$0xff]
        %v1819 = vld [vmem:[#allocation2 + $0x18] sm:$0xff]
        %v1820 = vmul.f32 %v1816, -0.5
        %v1821 = vmul.f32 %v1817, -0.5
        %v1822 = vmul.f32 %v1818, -0.5
        %v1823 = vmul.f32 %v1819, -0.5
        %v1824 = vmax.f32 %v1816, %v1820
        %v1825 = vmax.f32 %v1817, %v1821
        %v1826 = vmax.f32 %v1818, %v1822
        %v1827 = vmax.f32 %v1819, %v1823
        %s1828 = scalar_lea.vmem %s182, 192 [#allocation3]
        %1829 = vst.msk [vmem:[%s1828] sm:$0xff] %vm320, %v1824
        %1830 = vst.msk [vmem:[%s1828 + $0x8] sm:$0xff] %vm320, %v1825
        %1831 = vst.msk [vmem:[%s1828 + $0x10] sm:$0xff] %vm320, %v1826
        %1832 = vst.msk [vmem:[%s1828 + $0x18] sm:$0xff] %vm320, %v1827
        %v1834 = vsel %vm327, %v214, 0
        %1836 = vmatprep.subr.bf16.mxu0 0
        %1837 = vmatpush1.bf16.msra.mxu0 0
        %1838 = vmatprep.subr.bf16.mxu0 0
        %1839 = vmatpush1.bf16.msra.mxu0 0
        %1840 = vmatprep.subr.bf16.mxu0 0
        %1841 = vmatpush1.bf16.msra.mxu0 0
        %1842 = vmatprep.subr.bf16.mxu0 0
        %1843 = vmatpush1.bf16.msra.mxu0 0
        %1844 = vmatprep.subr.bf16.mxu0 0
        %1845 = vmatpush1.bf16.msra.mxu0 0
        %1846 = vmatprep.subr.bf16.mxu0 0
        %1847 = vmatpush1.bf16.msra.mxu0 0
        %1848 = vmatprep.subr.bf16.mxu0 0
        %1849 = vmatpush1.bf16.msra.mxu0 0
        %1850 = vmatprep.subr.bf16.mxu0 0
        %1851 = vmatpush1.bf16.msra.mxu0 %v1834
        %1852 = vmatprep.subr.bf16.mxu0 0
        %1853 = vmatpush2.bf16.msra.mxu0 0
        %1854 = vmatprep.subr.bf16.mxu0 0
        %1855 = vmatpush2.bf16.msra.mxu0 0
        %1856 = vmatprep.subr.bf16.mxu0 0
        %1857 = vmatpush2.bf16.msra.mxu0 0
        %1858 = vmatprep.subr.bf16.mxu0 0
        %1859 = vmatpush2.bf16.msra.mxu0 0
        %1860 = vmatprep.subr.bf16.mxu0 0
        %1861 = vmatpush2.bf16.msra.mxu0 0
        %1862 = vmatprep.subr.bf16.mxu0 0
        %1863 = vmatpush2.bf16.msra.mxu0 0
        %1864 = vmatprep.subr.bf16.mxu0 0
        %1865 = vmatpush2.bf16.msra.mxu0 0
        %1866 = vmatprep.subr.bf16.mxu0 0
        %1867 = vmatpush2.bf16.msra.mxu0 0
        %1868 = vmatprep.mubr.bf16.mxu0 0
        %1869 = vmatmul.mubr.bf16.gmra.mxu0 %v322
        %v1870 = vpop.f32.mrf.mxu0
        %v1871 = vadd.f32 0.0, %v1870
        %v1872 = vpop.f32.mrf.mxu0
        %v1873 = vpop.f32.mrf.mxu0
        %v1874 = vadd.f32 0.0, %v1873
        %v1875 = vpop.f32.mrf.mxu0
        %1876 = vmatprep.mubr.bf16.mxu0 0
        %1877 = vmatmul.mubr.bf16.gmra.mxu0 %v325
        %v1878 = vpop.f32.mrf.mxu0
        %v1879 = vadd.f32 0.0, %v1878
        %v1880 = vpop.f32.mrf.mxu0
        %v1881 = vpop.f32.mrf.mxu0
        %v1882 = vadd.f32 0.0, %v1881
        %v1883 = vpop.f32.mrf.mxu0
        %1884 = vdwg.mxu0
        %1885 = vst.msk [vmem:[#allocation2] sm:$0xff] %vm320, %v1871
        %1886 = vst.msk [vmem:[#allocation2 + $0x8] sm:$0xff] %vm320, %v1874
        %1887 = vst.msk [vmem:[#allocation2 + $0x10] sm:$0xff] %vm320, %v1879
        %1888 = vst.msk [vmem:[#allocation2 + $0x18] sm:$0xff] %vm320, %v1882
        %v1890 = vsel %vm327, %v217, 0
        %1892 = vmatprep.subr.bf16.mxu0 0
        %1893 = vmatpush1.bf16.msra.mxu0 0
        %1894 = vmatprep.subr.bf16.mxu0 0
        %1895 = vmatpush1.bf16.msra.mxu0 0
        %1896 = vmatprep.subr.bf16.mxu0 0
        %1897 = vmatpush1.bf16.msra.mxu0 0
        %1898 = vmatprep.subr.bf16.mxu0 0
        %1899 = vmatpush1.bf16.msra.mxu0 0
        %1900 = vmatprep.subr.bf16.mxu0 0
        %1901 = vmatpush1.bf16.msra.mxu0 0
        %1902 = vmatprep.subr.bf16.mxu0 0
        %1903 = vmatpush1.bf16.msra.mxu0 0
        %1904 = vmatprep.subr.bf16.mxu0 0
        %1905 = vmatpush1.bf16.msra.mxu0 0
        %1906 = vmatprep.subr.bf16.mxu0 0
        %1907 = vmatpush1.bf16.msra.mxu0 %v1890
        %1908 = vmatprep.subr.bf16.mxu0 0
        %1909 = vmatpush2.bf16.msra.mxu0 0
        %1910 = vmatprep.subr.bf16.mxu0 0
        %1911 = vmatpush2.bf16.msra.mxu0 0
        %1912 = vmatprep.subr.bf16.mxu0 0
        %1913 = vmatpush2.bf16.msra.mxu0 0
        %1914 = vmatprep.subr.bf16.mxu0 0
        %1915 = vmatpush2.bf16.msra.mxu0 0
        %1916 = vmatprep.subr.bf16.mxu0 0
        %1917 = vmatpush2.bf16.msra.mxu0 0
        %1918 = vmatprep.subr.bf16.mxu0 0
        %1919 = vmatpush2.bf16.msra.mxu0 0
        %1920 = vmatprep.subr.bf16.mxu0 0
        %1921 = vmatpush2.bf16.msra.mxu0 0
        %1922 = vmatprep.subr.bf16.mxu0 0
        %1923 = vmatpush2.bf16.msra.mxu0 0
        %1924 = vmatprep.mubr.bf16.mxu0 0
        %1925 = vmatmul.mubr.bf16.gmra.mxu0 %v395
        %v1926 = vpop.f32.mrf.mxu0
        %v1927 = vadd.f32 0.0, %v1926
        %v1928 = vpop.f32.mrf.mxu0
        %v1929 = vpop.f32.mrf.mxu0
        %v1930 = vadd.f32 0.0, %v1929
        %v1931 = vpop.f32.mrf.mxu0
        %1932 = vmatprep.mubr.bf16.mxu0 0
        %1933 = vmatmul.mubr.bf16.gmra.mxu0 %v398
        %v1934 = vpop.f32.mrf.mxu0
        %v1935 = vadd.f32 0.0, %v1934
        %v1936 = vpop.f32.mrf.mxu0
        %v1937 = vpop.f32.mrf.mxu0
        %v1938 = vadd.f32 0.0, %v1937
        %v1939 = vpop.f32.mrf.mxu0
        %1940 = vdwg.mxu0
        %v1941 = vld [vmem:[#allocation2] sm:$0xff]
        %v1942 = vld [vmem:[#allocation2 + $0x8] sm:$0xff]
        %v1943 = vld [vmem:[#allocation2 + $0x10] sm:$0xff]
        %v1944 = vld [vmem:[#allocation2 + $0x18] sm:$0xff]
        %v1945 = vadd.f32 %v1941, %v1927
        %v1946 = vadd.f32 %v1942, %v1930
        %v1947 = vadd.f32 %v1943, %v1935
        %v1948 = vadd.f32 %v1944, %v1938
        %1949 = vst.msk [vmem:[#allocation2] sm:$0xff] %vm320, %v1945
        %1950 = vst.msk [vmem:[#allocation2 + $0x8] sm:$0xff] %vm320, %v1946
        %1951 = vst.msk [vmem:[#allocation2 + $0x10] sm:$0xff] %vm320, %v1947
        %1952 = vst.msk [vmem:[#allocation2 + $0x18] sm:$0xff] %vm320, %v1948
        %v1953 = vld [vmem:[#allocation2] sm:$0xff]
        %v1954 = vld [vmem:[#allocation2 + $0x8] sm:$0xff]
        %v1955 = vld [vmem:[#allocation2 + $0x10] sm:$0xff]
        %v1956 = vld [vmem:[#allocation2 + $0x18] sm:$0xff]
        %v1957 = vmul.f32 %v1953, -0.5
        %v1958 = vmul.f32 %v1954, -0.5
        %v1959 = vmul.f32 %v1955, -0.5
        %v1960 = vmul.f32 %v1956, -0.5
        %v1961 = vmax.f32 %v1953, %v1957
        %v1962 = vmax.f32 %v1954, %v1958
        %v1963 = vmax.f32 %v1955, %v1959
        %v1964 = vmax.f32 %v1956, %v1960
        %s1965 = scalar_lea.vmem %s182, 224 [#allocation3]
        %1966 = vst.msk [vmem:[%s1965] sm:$0xff] %vm320, %v1961
        %1967 = vst.msk [vmem:[%s1965 + $0x8] sm:$0xff] %vm320, %v1962
        %1968 = vst.msk [vmem:[%s1965 + $0x10] sm:$0xff] %vm320, %v1963
        %1969 = vst.msk [vmem:[%s1965 + $0x18] sm:$0xff] %vm320, %v1964
        %v1971 = vsel %vm327, %v215, 0
        %1973 = vmatprep.subr.bf16.mxu0 0
        %1974 = vmatpush1.bf16.msra.mxu0 0
        %1975 = vmatprep.subr.bf16.mxu0 0
        %1976 = vmatpush1.bf16.msra.mxu0 0
        %1977 = vmatprep.subr.bf16.mxu0 0
        %1978 = vmatpush1.bf16.msra.mxu0 0
        %1979 = vmatprep.subr.bf16.mxu0 0
        %1980 = vmatpush1.bf16.msra.mxu0 0
        %1981 = vmatprep.subr.bf16.mxu0 0
        %1982 = vmatpush1.bf16.msra.mxu0 0
        %1983 = vmatprep.subr.bf16.mxu0 0
        %1984 = vmatpush1.bf16.msra.mxu0 0
        %1985 = vmatprep.subr.bf16.mxu0 0
        %1986 = vmatpush1.bf16.msra.mxu0 0
        %1987 = vmatprep.subr.bf16.mxu0 0
        %1988 = vmatpush1.bf16.msra.mxu0 %v1971
        %1989 = vmatprep.subr.bf16.mxu0 0
        %1990 = vmatpush2.bf16.msra.mxu0 0
        %1991 = vmatprep.subr.bf16.mxu0 0
        %1992 = vmatpush2.bf16.msra.mxu0 0
        %1993 = vmatprep.subr.bf16.mxu0 0
        %1994 = vmatpush2.bf16.msra.mxu0 0
        %1995 = vmatprep.subr.bf16.mxu0 0
        %1996 = vmatpush2.bf16.msra.mxu0 0
        %1997 = vmatprep.subr.bf16.mxu0 0
        %1998 = vmatpush2.bf16.msra.mxu0 0
        %1999 = vmatprep.subr.bf16.mxu0 0
        %2000 = vmatpush2.bf16.msra.mxu0 0
        %2001 = vmatprep.subr.bf16.mxu0 0
        %2002 = vmatpush2.bf16.msra.mxu0 0
        %2003 = vmatprep.subr.bf16.mxu0 0
        %2004 = vmatpush2.bf16.msra.mxu0 0
        %2005 = vmatprep.mubr.bf16.mxu0 0
        %2006 = vmatmul.mubr.bf16.gmra.mxu0 %v322
        %v2007 = vpop.f32.mrf.mxu0
        %v2008 = vadd.f32 0.0, %v2007
        %v2009 = vpop.f32.mrf.mxu0
        %v2010 = vpop.f32.mrf.mxu0
        %v2011 = vadd.f32 0.0, %v2010
        %v2012 = vpop.f32.mrf.mxu0
        %2013 = vmatprep.mubr.bf16.mxu0 0
        %2014 = vmatmul.mubr.bf16.gmra.mxu0 %v325
        %v2015 = vpop.f32.mrf.mxu0
        %v2016 = vadd.f32 0.0, %v2015
        %v2017 = vpop.f32.mrf.mxu0
        %v2018 = vpop.f32.mrf.mxu0
        %v2019 = vadd.f32 0.0, %v2018
        %v2020 = vpop.f32.mrf.mxu0
        %2021 = vdwg.mxu0
        %2022 = vst.msk [vmem:[#allocation2] sm:$0xff] %vm320, %v2008
        %2023 = vst.msk [vmem:[#allocation2 + $0x8] sm:$0xff] %vm320, %v2011
        %2024 = vst.msk [vmem:[#allocation2 + $0x10] sm:$0xff] %vm320, %v2016
        %2025 = vst.msk [vmem:[#allocation2 + $0x18] sm:$0xff] %vm320, %v2019
        %v2026 = vld [vmem:[#allocation2] sm:$0xff]
        %v2027 = vld [vmem:[#allocation2 + $0x8] sm:$0xff]
        %v2028 = vld [vmem:[#allocation2 + $0x10] sm:$0xff]
        %v2029 = vld [vmem:[#allocation2 + $0x18] sm:$0xff]
        %v2030 = vmul.f32 %v2026, -0.5
        %v2031 = vmul.f32 %v2027, -0.5
        %v2032 = vmul.f32 %v2028, -0.5
        %v2033 = vmul.f32 %v2029, -0.5
        %v2034 = vmax.f32 %v2026, %v2030
        %v2035 = vmax.f32 %v2027, %v2031
        %v2036 = vmax.f32 %v2028, %v2032
        %v2037 = vmax.f32 %v2029, %v2033
        %s2038 = scalar_lea.vmem %s182, 256 [#allocation3]
        %2039 = vst.msk [vmem:[%s2038] sm:$0xff] %vm320, %v2034
        %2040 = vst.msk [vmem:[%s2038 + $0x8] sm:$0xff] %vm320, %v2035
        %2041 = vst.msk [vmem:[%s2038 + $0x10] sm:$0xff] %vm320, %v2036
        %2042 = vst.msk [vmem:[%s2038 + $0x18] sm:$0xff] %vm320, %v2037
        %s2043 = sand.u32 %s102, 1
        %s2044 = sand.u32 %s102, 1
        %s2045 = smul.addr %s2044, 288
        %s2046 = scalar_lea.vmem [#allocation3], %s2045
        // Predicated region
        $region29: #{tpu_custom_call.1} parent=27 // pred_check
          %p2047 = pneg %p112
        $region30: #{tpu_custom_call.1} parent=27 // pred_check_branch
          %2049 = sbr.rel (%p2047) target = $region32
        $region31: #{tpu_custom_call.1} parent=27 // pred_region
          %s2050 = smul.u32 %s18, 2
          %s2051 = sadd.s32 %s2050, %s19
          %s2052 = smul.u32 9, %s2051
          %s2053 = smul.u32 4, %s20
          %s2054 = smul.addr %s2052, 8
          %s2055 = sadd.s32 %s2053, %s2054
          %s2056 = smul.addr %s2055, 8
          %s2057 = scalar_lea.vmem %s2, %s2056
          // Predicated region
          $region33: #{tpu_custom_call.1} parent=31 // pred_check
            _
          $region34: #{tpu_custom_call.1} parent=31 // pred_check_branch
            %2059 = sbr.rel (0) target = $region36
          $region35: #{tpu_custom_call.1} parent=31 // pred_region
            // Predicated region
            $region37: #{tpu_custom_call.1} parent=35 // pred_check
              _
            $region38: #{tpu_custom_call.1} parent=35 // pred_check_branch
              %2061 = sbr.rel (0) target = $region40
            $region39: #{tpu_custom_call.1} parent=35 // pred_region
              // Predicated region
              $region52: #{tpu_custom_call.1} parent=39 // pred_check
                _
              $region53: #{tpu_custom_call.1} parent=39 // pred_check_branch
                %2147 = sbr.rel (0) target = $region55
              $region54: #{tpu_custom_call.1} parent=39 // pred_region
                loop: start=0, step=1, limit=1
                $region56: #{tpu_custom_call.1} parent=54 // loop_pre_header
                  _
                $region57: #{tpu_custom_call.1} parent=54 // loop_header
                  %s2149 = sphi 0, %s2153
                  %p2150 = scmp.ge.s32.totalorder %s2149, 1
                  %s2154 = sphi %s2046, %s2046
                  %s2155 = sphi %s2057, %s2057
                $region58: #{tpu_custom_call.1} parent=54 // loop_header_branch
                  %2152 = sbr.rel (%p2150) target = $region62
                $region59: #{tpu_custom_call.1} parent=54 // loop_body
                  %v2156 = vld [vmem:[%s2154] sm:$0xff]
                  %2157 = vst [vmem:[%s2155] sm:$0xff] %v2156
                  %v2158 = vld [vmem:[%s2154 + $0x8] sm:$0xff]
                  %2159 = vst [vmem:[%s2155 + $0x8] sm:$0xff] %v2158
                  %v2160 = vld [vmem:[%s2154 + $0x10] sm:$0xff]
                  %2161 = vst [vmem:[%s2155 + $0x10] sm:$0xff] %v2160
                  %v2162 = vld [vmem:[%s2154 + $0x18] sm:$0xff]
                  %2163 = vst [vmem:[%s2155 + $0x18] sm:$0xff] %v2162
                  %v2164 = vld [vmem:[%s2154 + $0x20] sm:$0xff]
                  %2165 = vst [vmem:[%s2155 + $0x40] sm:$0xff] %v2164
                  %v2166 = vld [vmem:[%s2154 + $0x28] sm:$0xff]
                  %2167 = vst [vmem:[%s2155 + $0x48] sm:$0xff] %v2166
                  %v2168 = vld [vmem:[%s2154 + $0x30] sm:$0xff]
                  %2169 = vst [vmem:[%s2155 + $0x50] sm:$0xff] %v2168
                  %v2170 = vld [vmem:[%s2154 + $0x38] sm:$0xff]
                  %2171 = vst [vmem:[%s2155 + $0x58] sm:$0xff] %v2170
                  %v2172 = vld [vmem:[%s2154 + $0x40] sm:$0xff]
                  %2173 = vst [vmem:[%s2155 + $0x80] sm:$0xff] %v2172
                  %v2174 = vld [vmem:[%s2154 + $0x48] sm:$0xff]
                  %2175 = vst [vmem:[%s2155 + $0x88] sm:$0xff] %v2174
                  %v2176 = vld [vmem:[%s2154 + $0x50] sm:$0xff]
                  %2177 = vst [vmem:[%s2155 + $0x90] sm:$0xff] %v2176
                  %v2178 = vld [vmem:[%s2154 + $0x58] sm:$0xff]
                  %2179 = vst [vmem:[%s2155 + $0x98] sm:$0xff] %v2178
                  %v2180 = vld [vmem:[%s2154 + $0x60] sm:$0xff]
                  %2181 = vst [vmem:[%s2155 + $0xc0] sm:$0xff] %v2180
                  %v2182 = vld [vmem:[%s2154 + $0x68] sm:$0xff]
                  %2183 = vst [vmem:[%s2155 + $0xc8] sm:$0xff] %v2182
                  %v2184 = vld [vmem:[%s2154 + $0x70] sm:$0xff]
                  %2185 = vst [vmem:[%s2155 + $0xd0] sm:$0xff] %v2184
                  %v2186 = vld [vmem:[%s2154 + $0x78] sm:$0xff]
                  %2187 = vst [vmem:[%s2155 + $0xd8] sm:$0xff] %v2186
                  %v2188 = vld [vmem:[%s2154 + $0x80] sm:$0xff]
                  %2189 = vst [vmem:[%s2155 + $0x100] sm:$0xff] %v2188
                  %v2190 = vld [vmem:[%s2154 + $0x88] sm:$0xff]
                  %2191 = vst [vmem:[%s2155 + $0x108] sm:$0xff] %v2190
                  %v2192 = vld [vmem:[%s2154 + $0x90] sm:$0xff]
                  %2193 = vst [vmem:[%s2155 + $0x110] sm:$0xff] %v2192
                  %v2194 = vld [vmem:[%s2154 + $0x98] sm:$0xff]
                  %2195 = vst [vmem:[%s2155 + $0x118] sm:$0xff] %v2194
                  %v2196 = vld [vmem:[%s2154 + $0xa0] sm:$0xff]
                  %2197 = vst [vmem:[%s2155 + $0x140] sm:$0xff] %v2196
                  %v2198 = vld [vmem:[%s2154 + $0xa8] sm:$0xff]
                  %2199 = vst [vmem:[%s2155 + $0x148] sm:$0xff] %v2198
                  %v2200 = vld [vmem:[%s2154 + $0xb0] sm:$0xff]
                  %2201 = vst [vmem:[%s2155 + $0x150] sm:$0xff] %v2200
                  %v2202 = vld [vmem:[%s2154 + $0xb8] sm:$0xff]
                  %2203 = vst [vmem:[%s2155 + $0x158] sm:$0xff] %v2202
                  %v2204 = vld [vmem:[%s2154 + $0xc0] sm:$0xff]
                  %2205 = vst [vmem:[%s2155 + $0x180] sm:$0xff] %v2204
                  %v2206 = vld [vmem:[%s2154 + $0xc8] sm:$0xff]
                  %2207 = vst [vmem:[%s2155 + $0x188] sm:$0xff] %v2206
                  %v2208 = vld [vmem:[%s2154 + $0xd0] sm:$0xff]
                  %2209 = vst [vmem:[%s2155 + $0x190] sm:$0xff] %v2208
                  %v2210 = vld [vmem:[%s2154 + $0xd8] sm:$0xff]
                  %2211 = vst [vmem:[%s2155 + $0x198] sm:$0xff] %v2210
                  %v2212 = vld [vmem:[%s2154 + $0xe0] sm:$0xff]
                  %2213 = vst [vmem:[%s2155 + $0x1c0] sm:$0xff] %v2212
                  %v2214 = vld [vmem:[%s2154 + $0xe8] sm:$0xff]
                  %2215 = vst [vmem:[%s2155 + $0x1c8] sm:$0xff] %v2214
                  %v2216 = vld [vmem:[%s2154 + $0xf0] sm:$0xff]
                  %2217 = vst [vmem:[%s2155 + $0x1d0] sm:$0xff] %v2216
                  %v2218 = vld [vmem:[%s2154 + $0xf8] sm:$0xff]
                  %2219 = vst [vmem:[%s2155 + $0x1d8] sm:$0xff] %v2218
                  %v2220 = vld [vmem:[%s2154 + $0x100] sm:$0xff]
                  %2221 = vst [vmem:[%s2155 + $0x200] sm:$0xff] %v2220
                  %v2222 = vld [vmem:[%s2154 + $0x108] sm:$0xff]
                  %2223 = vst [vmem:[%s2155 + $0x208] sm:$0xff] %v2222
                  %v2224 = vld [vmem:[%s2154 + $0x110] sm:$0xff]
                  %2225 = vst [vmem:[%s2155 + $0x210] sm:$0xff] %v2224
                  %v2226 = vld [vmem:[%s2154 + $0x118] sm:$0xff]
                  %2227 = vst [vmem:[%s2155 + $0x218] sm:$0xff] %v2226
                $region60: #{tpu_custom_call.1} parent=54 // loop_footer
                  %s2153 = sadd.s32 1, %s2149
                $region61: #{tpu_custom_call.1} parent=54 // loop_footer_branch
                  %2148 = sbr.rel target = $region57
                $region62: #{tpu_custom_call.1} parent=54 // loop_exit
                  _
              $region55: #{tpu_custom_call.1} parent=39 // pred_fallthru
                _
              // Predicated region
              $region63: #{tpu_custom_call.1} parent=39 // pred_check
                _
              $region64: #{tpu_custom_call.1} parent=39 // pred_check_branch
                %2229 = sbr.rel target = $region66
              $region65: #{tpu_custom_call.1} parent=39 // pred_region
                _
              $region66: #{tpu_custom_call.1} parent=39 // pred_fallthru
                _
            $region40: #{tpu_custom_call.1} parent=35 // pred_fallthru
              _
            // Predicated region
            $region41: #{tpu_custom_call.1} parent=35 // pred_check
              _
            $region42: #{tpu_custom_call.1} parent=35 // pred_check_branch
              %2063 = sbr.rel target = $region44
            $region43: #{tpu_custom_call.1} parent=35 // pred_region
              %s2065 = ssub.s32 256, 1
              loop: start=0, step=1, limit=1
              $region45: #{tpu_custom_call.1} parent=43 // loop_pre_header
                _
              $region46: #{tpu_custom_call.1} parent=43 // loop_header
                %s2067 = sphi 0, %s2071
                %p2068 = scmp.ge.s32.totalorder %s2067, 1
                %s2072 = sphi %s2046, %s2046
                %s2073 = sphi %s2057, %s2057
              $region47: #{tpu_custom_call.1} parent=43 // loop_header_branch
                %2070 = sbr.rel (%p2068) target = $region51
              $region48: #{tpu_custom_call.1} parent=43 // loop_body
                %v2074 = vld [vmem:[%s2072] sm:%s2065]
                %2075 = vst [vmem:[%s2073] sm:%s2065] %v2074
                %v2076 = vld [vmem:[%s2072 + $0x8] sm:%s2065]
                %2077 = vst [vmem:[%s2073 + $0x8] sm:%s2065] %v2076
                %v2078 = vld [vmem:[%s2072 + $0x10] sm:%s2065]
                %2079 = vst [vmem:[%s2073 + $0x10] sm:%s2065] %v2078
                %v2080 = vld [vmem:[%s2072 + $0x18] sm:%s2065]
                %2081 = vst [vmem:[%s2073 + $0x18] sm:%s2065] %v2080
                %v2082 = vld [vmem:[%s2072 + $0x20] sm:%s2065]
                %2083 = vst [vmem:[%s2073 + $0x40] sm:%s2065] %v2082
                %v2084 = vld [vmem:[%s2072 + $0x28] sm:%s2065]
                %2085 = vst [vmem:[%s2073 + $0x48] sm:%s2065] %v2084
                %v2086 = vld [vmem:[%s2072 + $0x30] sm:%s2065]
                %2087 = vst [vmem:[%s2073 + $0x50] sm:%s2065] %v2086
                %v2088 = vld [vmem:[%s2072 + $0x38] sm:%s2065]
                %2089 = vst [vmem:[%s2073 + $0x58] sm:%s2065] %v2088
                %v2090 = vld [vmem:[%s2072 + $0x40] sm:%s2065]
                %2091 = vst [vmem:[%s2073 + $0x80] sm:%s2065] %v2090
                %v2092 = vld [vmem:[%s2072 + $0x48] sm:%s2065]
                %2093 = vst [vmem:[%s2073 + $0x88] sm:%s2065] %v2092
                %v2094 = vld [vmem:[%s2072 + $0x50] sm:%s2065]
                %2095 = vst [vmem:[%s2073 + $0x90] sm:%s2065] %v2094
                %v2096 = vld [vmem:[%s2072 + $0x58] sm:%s2065]
                %2097 = vst [vmem:[%s2073 + $0x98] sm:%s2065] %v2096
                %v2098 = vld [vmem:[%s2072 + $0x60] sm:%s2065]
                %2099 = vst [vmem:[%s2073 + $0xc0] sm:%s2065] %v2098
                %v2100 = vld [vmem:[%s2072 + $0x68] sm:%s2065]
                %2101 = vst [vmem:[%s2073 + $0xc8] sm:%s2065] %v2100
                %v2102 = vld [vmem:[%s2072 + $0x70] sm:%s2065]
                %2103 = vst [vmem:[%s2073 + $0xd0] sm:%s2065] %v2102
                %v2104 = vld [vmem:[%s2072 + $0x78] sm:%s2065]
                %2105 = vst [vmem:[%s2073 + $0xd8] sm:%s2065] %v2104
                %v2106 = vld [vmem:[%s2072 + $0x80] sm:%s2065]
                %2107 = vst [vmem:[%s2073 + $0x100] sm:%s2065] %v2106
                %v2108 = vld [vmem:[%s2072 + $0x88] sm:%s2065]
                %2109 = vst [vmem:[%s2073 + $0x108] sm:%s2065] %v2108
                %v2110 = vld [vmem:[%s2072 + $0x90] sm:%s2065]
                %2111 = vst [vmem:[%s2073 + $0x110] sm:%s2065] %v2110
                %v2112 = vld [vmem:[%s2072 + $0x98] sm:%s2065]
                %2113 = vst [vmem:[%s2073 + $0x118] sm:%s2065] %v2112
                %v2114 = vld [vmem:[%s2072 + $0xa0] sm:%s2065]
                %2115 = vst [vmem:[%s2073 + $0x140] sm:%s2065] %v2114
                %v2116 = vld [vmem:[%s2072 + $0xa8] sm:%s2065]
                %2117 = vst [vmem:[%s2073 + $0x148] sm:%s2065] %v2116
                %v2118 = vld [vmem:[%s2072 + $0xb0] sm:%s2065]
                %2119 = vst [vmem:[%s2073 + $0x150] sm:%s2065] %v2118
                %v2120 = vld [vmem:[%s2072 + $0xb8] sm:%s2065]
                %2121 = vst [vmem:[%s2073 + $0x158] sm:%s2065] %v2120
                %v2122 = vld [vmem:[%s2072 + $0xc0] sm:%s2065]
                %2123 = vst [vmem:[%s2073 + $0x180] sm:%s2065] %v2122
                %v2124 = vld [vmem:[%s2072 + $0xc8] sm:%s2065]
                %2125 = vst [vmem:[%s2073 + $0x188] sm:%s2065] %v2124
                %v2126 = vld [vmem:[%s2072 + $0xd0] sm:%s2065]
                %2127 = vst [vmem:[%s2073 + $0x190] sm:%s2065] %v2126
                %v2128 = vld [vmem:[%s2072 + $0xd8] sm:%s2065]
                %2129 = vst [vmem:[%s2073 + $0x198] sm:%s2065] %v2128
                %v2130 = vld [vmem:[%s2072 + $0xe0] sm:%s2065]
                %2131 = vst [vmem:[%s2073 + $0x1c0] sm:%s2065] %v2130
                %v2132 = vld [vmem:[%s2072 + $0xe8] sm:%s2065]
                %2133 = vst [vmem:[%s2073 + $0x1c8] sm:%s2065] %v2132
                %v2134 = vld [vmem:[%s2072 + $0xf0] sm:%s2065]
                %2135 = vst [vmem:[%s2073 + $0x1d0] sm:%s2065] %v2134
                %v2136 = vld [vmem:[%s2072 + $0xf8] sm:%s2065]
                %2137 = vst [vmem:[%s2073 + $0x1d8] sm:%s2065] %v2136
                %v2138 = vld [vmem:[%s2072 + $0x100] sm:%s2065]
                %2139 = vst [vmem:[%s2073 + $0x200] sm:%s2065] %v2138
                %v2140 = vld [vmem:[%s2072 + $0x108] sm:%s2065]
                %2141 = vst [vmem:[%s2073 + $0x208] sm:%s2065] %v2140
                %v2142 = vld [vmem:[%s2072 + $0x110] sm:%s2065]
                %2143 = vst [vmem:[%s2073 + $0x210] sm:%s2065] %v2142
                %v2144 = vld [vmem:[%s2072 + $0x118] sm:%s2065]
                %2145 = vst [vmem:[%s2073 + $0x218] sm:%s2065] %v2144
              $region49: #{tpu_custom_call.1} parent=43 // loop_footer
                %s2071 = sadd.s32 1, %s2067
              $region50: #{tpu_custom_call.1} parent=43 // loop_footer_branch
                %2066 = sbr.rel target = $region46
              $region51: #{tpu_custom_call.1} parent=43 // loop_exit
                _
            $region44: #{tpu_custom_call.1} parent=35 // pred_fallthru
              _
          $region36: #{tpu_custom_call.1} parent=31 // pred_fallthru
            _
          %2230 = vnop
        $region32: #{tpu_custom_call.1} parent=27 // pred_fallthru
          _
      $region28: #{tpu_custom_call.1} parent=5 // pred_fallthru
        _
      %p2231 = scmp.le.s32.totalorder 2, %s8
      // Predicated region
      $region67: #{tpu_custom_call.1} parent=5 // pred_check
        %p2232 = pneg %p2231
      $region68: #{tpu_custom_call.1} parent=5 // pred_check_branch
        %2234 = sbr.rel (%p2232) target = $region70
      $region69: #{tpu_custom_call.1} parent=5 // pred_region
        %s2235 = ssub.s32 %s8, 2
        // Predicated region
        $region71: #{tpu_custom_call.1} parent=69 // pred_check
          %p2236 = pneg %p118
        $region72: #{tpu_custom_call.1} parent=69 // pred_check_branch
          %2238 = sbr.rel (%p2236) target = $region74
        $region73: #{tpu_custom_call.1} parent=69 // pred_region
          %s2239 = sand.u32 %s103, 1
          %s2240 = sand.u32 %s103, 1
          %s2241 = smul.addr %s2240, 288
          %s2242 = scalar_lea.vmem [#allocation3], %s2241
        $region74: #{tpu_custom_call.1} parent=69 // pred_fallthru
          _
      $region70: #{tpu_custom_call.1} parent=5 // pred_fallthru
        _
    $region6: #{tpu_custom_call.1} parent=1 // loop_footer
      %s12 = sadd.s32 1, %s8
    $region7: #{tpu_custom_call.1} parent=1 // loop_footer_branch
      %7 = sbr.rel target = $region3
    $region8: #{tpu_custom_call.1} parent=1 // loop_exit
      _

</llo_original>
